<compile_context>
chip_gen: v7x
topology: tpu7x:2x2x1
jax: 0.10.0
libtpu: 0.0.40
codegen_flags: <defaults>
</compile_context>

<pallas_src>
import functools

import jax
import jax.numpy as jnp
from jax import lax
from jax.experimental import pallas as pl
from jax.experimental.pallas import tpu as pltpu


def _mha_kernel(q_ref, k_ref, v_ref, mask_ref,
                wq_ref, wk_ref, wv_ref, wo_ref,
                out_ref, attw_ref,
                *, scale, num_heads, dk, dv, batch_block, compute_dtype):
    cd = compute_dtype
    bb, Lq, Din = q_ref.shape
    Lk = k_ref.shape[1]

    # Fold the batch block into sublanes (major-dim collapse; lane dim untouched)
    # so each projection is a single wide-M MXU matmul.
    q2 = q_ref[...].reshape(bb * Lq, Din).astype(cd)
    k2 = k_ref[...].reshape(bb * Lk, Din).astype(cd)
    v2 = v_ref[...].reshape(bb * Lk, Din).astype(cd)

    wq = wq_ref[...]          # [Din, Dk]  already bf16
    wk = wk_ref[...]          # [Din, Dk]
    wv = wv_ref[...]          # [Din, Dv]
    wo = wo_ref[...]          # [Dv, Dout]

    qp = jnp.dot(q2, wq, preferred_element_type=jnp.float32) * scale   # [bb*Lq, Dk] f32
    kp = jnp.dot(k2, wk, preferred_element_type=jnp.float32)           # [bb*Lk, Dk]
    vp = jnp.dot(v2, wv, preferred_element_type=jnp.float32)           # [bb*Lk, Dv]

    neg_big = jnp.float32(-1e18)
    inv_h = jnp.float32(1.0 / num_heads)

    # Static loops (small bb / num_heads, static lane slices).  At realistic
    # Lq/Lk tile sizes this should become lax.fori_loop to bound live ranges,
    # and an Lk grid axis (flash-style online softmax) should be added.
    for b in range(batch_block):
        qb = qp[b * Lq:(b + 1) * Lq, :]        # [Lq, Dk]
        kb = kp[b * Lk:(b + 1) * Lk, :]        # [Lk, Dk]
        vb = vp[b * Lk:(b + 1) * Lk, :]        # [Lk, Dv]
        masked = mask_ref[b] != 0              # [Lq, Lk] bool (True => disallowed)

        # attention_weights: sum over heads of qh @ kh^T == one full-Dk matmul.
        # Reference sums MASKED logits / H; masked entries are -1e18 in every
        # head, so masking once after the average is identical.
        attw = lax.dot_general(qb.astype(cd), kb.astype(cd),
                               (((1,), (1,)), ((), ())),
                               preferred_element_type=jnp.float32)      # [Lq, Lk]
        attw_ref[b] = jnp.where(masked, neg_big, attw * inv_h).astype(attw_ref.dtype)

        ctx_heads = []
        for h in range(num_heads):
            qh = qb[:, h * dk:(h + 1) * dk].astype(cd)   # [Lq, dk]
            kh = kb[:, h * dk:(h + 1) * dk].astype(cd)   # [Lk, dk]
            vh = vb[:, h * dv:(h + 1) * dv].astype(cd)   # [Lk, dv]

            logits = lax.dot_general(qh, kh, (((1,), (1,)), ((), ())),
                                     preferred_element_type=jnp.float32)  # [Lq, Lk]
            ml = jnp.where(masked, neg_big, logits)

            # f32 softmax: exp on EUP, row-normalize via approximate reciprocal (EUP).
            # Fully-masked rows: max subtraction gives exp(0)=1 everywhere -> uniform
            # weights, matching the reference softmax (no 1/0).
            row_max = jnp.max(ml, axis=-1, keepdims=True)
            p = jnp.exp(ml - row_max)
            inv_den = pl.reciprocal(jnp.sum(p, axis=-1, keepdims=True), approx=True)
            w = (p * inv_den).astype(cd)
            # TODO(synk): dropout on attention weights is identity at p=0.0 (inference).

            ctx_heads.append(jnp.dot(w, vh, preferred_element_type=jnp.float32))

        # merge_heads == lane concatenation, then ONE full-depth output projection.
        ctx = jnp.concatenate(ctx_heads, axis=-1).astype(cd)             # [Lq, Dv]
        out_ref[b] = jnp.dot(ctx, wo,
                             preferred_element_type=jnp.float32).astype(out_ref.dtype)


def _pick_batch_block(batch, seq_q, target_rows=128):
    """Largest divisor of `batch` such that batch_block * seq_q <~ target_rows."""
    bb = max(1, min(batch, target_rows // max(seq_q, 1)))
    while batch % bb:
        bb -= 1
    return max(bb, 1)


def multi_head_attention(queries, keys, values, mask, wq, wk, wv, wo, num_heads,
                         batch_block=None, compute_dtype=jnp.bfloat16):
    """queries/keys/values: [B, L, Din] f32; mask: [B, Lq, Lk] (nonzero/True = masked).
    wq/wk: [Din, Dk], wv: [Din, Dv], wo: [Dv, Dout]  (input-major, i.e. torch W.T)."""
    B, Lq, Din = queries.shape
    Lk = keys.shape[1]
    Dk = wq.shape[1]
    Dv = wv.shape[1]
    Dout = wo.shape[1]
    dk = Dk // num_heads
    dv = Dv // num_heads
    scale = float(dk) ** (-0.5)

    if batch_block is None:
        batch_block = _pick_batch_block(B, Lq)
    assert B % batch_block == 0

    mask_i8 = mask.astype(jnp.int8)            # 4x less HBM traffic than an f32 mask
    # Weights in bf16: half the DMA/VMEM footprint, no per-iteration in-kernel cast.
    wq_c = wq.astype(compute_dtype)
    wk_c = wk.astype(compute_dtype)
    wv_c = wv.astype(compute_dtype)
    wo_c = wo.astype(compute_dtype)

    kernel = functools.partial(_mha_kernel, scale=scale, num_heads=num_heads,
                               dk=dk, dv=dv, batch_block=batch_block,
                               compute_dtype=compute_dtype)

    out, attw = pl.pallas_call(
        kernel,
        out_shape=(
            jax.ShapeDtypeStruct((B, Lq, Dout), jnp.float32),
            jax.ShapeDtypeStruct((B, Lq, Lk), jnp.float32),
        ),
        grid_spec=pltpu.PrefetchScalarGridSpec(
            num_scalar_prefetch=0,
            grid=(B // batch_block,),
            in_specs=[
                pl.BlockSpec((batch_block, Lq, Din), lambda b: (b, 0, 0)),  # queries
                pl.BlockSpec((batch_block, Lk, Din), lambda b: (b, 0, 0)),  # keys
                pl.BlockSpec((batch_block, Lk, Din), lambda b: (b, 0, 0)),  # values
                pl.BlockSpec((batch_block, Lq, Lk), lambda b: (b, 0, 0)),   # mask (int8)
                # Weights: constant block index -> DMA'd once, resident across grid.
                # (On v7x, pipeline_mode=pl.Buffered(1) would drop their second
                #  pipeline buffer when Din/Dk grow.)
                pl.BlockSpec((Din, Dk), lambda b: (0, 0)),                  # Wq
                pl.BlockSpec((Din, Dk), lambda b: (0, 0)),                  # Wk
                pl.BlockSpec((Din, Dv), lambda b: (0, 0)),                  # Wv
                pl.BlockSpec((Dv, Dout), lambda b: (0, 0)),                 # Wo
            ],
            out_specs=[
                pl.BlockSpec((batch_block, Lq, Dout), lambda b: (b, 0, 0)),
                pl.BlockSpec((batch_block, Lq, Lk), lambda b: (b, 0, 0)),
            ],
        ),
        compiler_params=pltpu.CompilerParams(
            dimension_semantics=("parallel",),        # batch blocks shard across TCs
            vmem_limit_bytes=64 * 1024 * 1024),       # headroom for larger shapes
    )(queries, keys, values, mask_i8, wq_c, wk_c, wv_c, wo_c)
    return out, attw


def reference_mha(queries, keys, values, mask_bool, wq, wk, wv, wo, num_heads):
    """Pure-JAX f32 reference mirroring the PyTorch module semantics."""
    B, Lq, _ = queries.shape
    Dk = wq.shape[1]
    Dv = wv.shape[1]
    dk = Dk // num_heads
    dv = Dv // num_heads
    scale = float(dk) ** (-0.5)

    def split(x, hd):
        b, l, _ = x.shape
        return x.reshape(b, l, num_heads, hd).transpose(0, 2, 1, 3)

    Q = split(queries @ wq, dk) * scale
    K = split(keys @ wk, dk)
    V = split(values @ wv, dv)
    logits = jnp.einsum("bhqd,bhkd->bhqk", Q, K)
    logits = jnp.where(mask_bool[:, None, :, :], -1e18, logits)
    attw = logits.sum(axis=1) / num_heads
    w = jax.nn.softmax(logits, axis=-1)
    ctx = jnp.einsum("bhqk,bhkd->bhqd", w, V)
    ctx = ctx.transpose(0, 2, 1, 3).reshape(B, Lq, Dv)
    out = ctx @ wo
    return out, attw


if __name__ == "__main__":
    B, L = 2, 8
    input_depth = 32
    total_key_depth = 32
    total_value_depth = 32
    output_depth = 32
    num_heads = 4

    key = jax.random.PRNGKey(0)
    k0, k1, k2, k3, k4, k5, k6 = jax.random.split(key, 7)

    queries = jax.random.normal(k0, (B, L, input_depth), jnp.float32)
    keys = jax.random.normal(k1, (B, L, input_depth), jnp.float32)
    values = jax.random.normal(k2, (B, L, input_depth), jnp.float32)

    # Deterministic "Linear" weights, stored input-major ([in, out] = torch W.T).
    wq = jax.random.normal(k3, (input_depth, total_key_depth), jnp.float32) * 0.1
    wk = jax.random.normal(k4, (input_depth, total_key_depth), jnp.float32) * 0.1
    wv = jax.random.normal(k5, (input_depth, total_value_depth), jnp.float32) * 0.1
    wo = jax.random.normal(k6, (total_value_depth, output_depth), jnp.float32) * 0.1

    # Causal mask: True where attention to future positions is disallowed.
    causal = jnp.triu(jnp.ones((L, L), dtype=bool), k=1)
    mask_bool = jnp.broadcast_to(causal, (B, L, L))

    out, attw = multi_head_attention(queries, keys, values, mask_bool,
                                     wq, wk, wv, wo, num_heads)
    out = jax.block_until_ready(out)
    attw = jax.block_until_ready(attw)

    ref_out, ref_attw = reference_mha(queries, keys, values, mask_bool,
                                      wq, wk, wv, wo, num_heads)

    # MXU operands are bf16 (f32 accumulation), so compare against the f32
    # reference with correspondingly looser tolerances (expected, not a bug).
    assert jnp.allclose(out, ref_out, rtol=5e-2, atol=5e-2), "output mismatch"
    assert jnp.allclose(attw, ref_attw, rtol=5e-2, atol=5e-2), "attw mismatch"

    print("KERNEL_OK")
</pallas_src>

<mosaic_0001>
module attributes {stable_mosaic.version = 11 : i64} {
  func.func @_mha_kernel(%arg0: i32, %arg1: memref<2x8x32xf32, #tpu.memory_space<vmem>>, %arg2: memref<2x8x32xf32, #tpu.memory_space<vmem>>, %arg3: memref<2x8x32xf32, #tpu.memory_space<vmem>>, %arg4: memref<2x8x8xi8, #tpu.memory_space<vmem>>, %arg5: memref<32x32xbf16, #tpu.memory_space<vmem>>, %arg6: memref<32x32xbf16, #tpu.memory_space<vmem>>, %arg7: memref<32x32xbf16, #tpu.memory_space<vmem>>, %arg8: memref<32x32xbf16, #tpu.memory_space<vmem>>, %arg9: memref<2x8x32xf32, #tpu.memory_space<vmem>>, %arg10: memref<2x8x8xf32, #tpu.memory_space<vmem>>) attributes {dimension_semantics = [#tpu.dimension_semantics<parallel>], iteration_bounds = array<i64: 1>, scalar_prefetch = 0 : i64, scratch_operands = 0 : i64, tpu.core_type = #tpu.core_type<tc>, window_params = [{transform_indices = @transform_0, window_bounds = array<i64: 2, 8, 32>}, {transform_indices = @transform_1, window_bounds = array<i64: 2, 8, 32>}, {transform_indices = @transform_2, window_bounds = array<i64: 2, 8, 32>}, {transform_indices = @transform_3, window_bounds = array<i64: 2, 8, 8>}, {pipeline_mode = #tpu.pipeline_mode<synchronous>, transform_indices = @transform_4, window_bounds = array<i64: 32, 32>}, {pipeline_mode = #tpu.pipeline_mode<synchronous>, transform_indices = @transform_5, window_bounds = array<i64: 32, 32>}, {pipeline_mode = #tpu.pipeline_mode<synchronous>, transform_indices = @transform_6, window_bounds = array<i64: 32, 32>}, {pipeline_mode = #tpu.pipeline_mode<synchronous>, transform_indices = @transform_7, window_bounds = array<i64: 32, 32>}, {transform_indices = @transform_8, window_bounds = array<i64: 2, 8, 32>}, {transform_indices = @transform_9, window_bounds = array<i64: 2, 8, 8>}]} {
    %c0 = arith.constant 0 : index
    %c0_0 = arith.constant 0 : index
    %c0_1 = arith.constant 0 : index
    %0 = vector.load %arg1[%c0, %c0_0, %c0_1] : memref<2x8x32xf32, #tpu.memory_space<vmem>>, vector<2x8x32xf32>
    %1 = vector.shape_cast %0 : vector<2x8x32xf32> to vector<16x32xf32>
    %2 = arith.truncf %1 : vector<16x32xf32> to vector<16x32xbf16>
    %c0_2 = arith.constant 0 : index
    %c0_3 = arith.constant 0 : index
    %c0_4 = arith.constant 0 : index
    %3 = vector.load %arg2[%c0_2, %c0_3, %c0_4] : memref<2x8x32xf32, #tpu.memory_space<vmem>>, vector<2x8x32xf32>
    %4 = vector.shape_cast %3 : vector<2x8x32xf32> to vector<16x32xf32>
    %5 = arith.truncf %4 : vector<16x32xf32> to vector<16x32xbf16>
    %c0_5 = arith.constant 0 : index
    %c0_6 = arith.constant 0 : index
    %c0_7 = arith.constant 0 : index
    %6 = vector.load %arg3[%c0_5, %c0_6, %c0_7] : memref<2x8x32xf32, #tpu.memory_space<vmem>>, vector<2x8x32xf32>
    %7 = vector.shape_cast %6 : vector<2x8x32xf32> to vector<16x32xf32>
    %8 = arith.truncf %7 : vector<16x32xf32> to vector<16x32xbf16>
    %c0_8 = arith.constant 0 : index
    %c0_9 = arith.constant 0 : index
    %9 = vector.load %arg5[%c0_8, %c0_9] : memref<32x32xbf16, #tpu.memory_space<vmem>>, vector<32x32xbf16>
    %c0_10 = arith.constant 0 : index
    %c0_11 = arith.constant 0 : index
    %10 = vector.load %arg6[%c0_10, %c0_11] : memref<32x32xbf16, #tpu.memory_space<vmem>>, vector<32x32xbf16>
    %c0_12 = arith.constant 0 : index
    %c0_13 = arith.constant 0 : index
    %11 = vector.load %arg7[%c0_12, %c0_13] : memref<32x32xbf16, #tpu.memory_space<vmem>>, vector<32x32xbf16>
    %c0_14 = arith.constant 0 : index
    %c0_15 = arith.constant 0 : index
    %12 = vector.load %arg8[%c0_14, %c0_15] : memref<32x32xbf16, #tpu.memory_space<vmem>>, vector<32x32xbf16>
    %cst = arith.constant dense<0.000000e+00> : vector<16x32xf32>
    %13 = tpu.matmul %2, %9, %cst {dimension_numbers = #tpu.dot_dimension_numbers<[1], [0], [0], [1], [0, 0, 1, 1], [], []>} : vector<16x32xbf16>, vector<32x32xbf16>, vector<16x32xf32> -> vector<16x32xf32>
    %cst_16 = arith.constant 0.353553385 : f32
    %14 = vector.broadcast %cst_16 : f32 to vector<16x32xf32>
    %15 = arith.mulf %13, %14 : vector<16x32xf32>
    %cst_17 = arith.constant dense<0.000000e+00> : vector<16x32xf32>
    %16 = tpu.matmul %5, %10, %cst_17 {dimension_numbers = #tpu.dot_dimension_numbers<[1], [0], [0], [1], [0, 0, 1, 1], [], []>} : vector<16x32xbf16>, vector<32x32xbf16>, vector<16x32xf32> -> vector<16x32xf32>
    %cst_18 = arith.constant dense<0.000000e+00> : vector<16x32xf32>
    %17 = tpu.matmul %8, %11, %cst_18 {dimension_numbers = #tpu.dot_dimension_numbers<[1], [0], [0], [1], [0, 0, 1, 1], [], []>} : vector<16x32xbf16>, vector<32x32xbf16>, vector<16x32xf32> -> vector<16x32xf32>
    %18 = vector.extract_strided_slice %15 {offsets = [0, 0], sizes = [8, 32], strides = [1, 1]} : vector<16x32xf32> to vector<8x32xf32>
    %19 = vector.extract_strided_slice %16 {offsets = [0, 0], sizes = [8, 32], strides = [1, 1]} : vector<16x32xf32> to vector<8x32xf32>
    %20 = vector.extract_strided_slice %17 {offsets = [0, 0], sizes = [8, 32], strides = [1, 1]} : vector<16x32xf32> to vector<8x32xf32>
    %c0_19 = arith.constant 0 : index
    %c0_20 = arith.constant 0 : index
    %c0_21 = arith.constant 0 : index
    %21 = vector.load %arg4[%c0_19, %c0_20, %c0_21] : memref<2x8x8xi8, #tpu.memory_space<vmem>>, vector<1x8x8xi8>
    %22 = vector.shape_cast %21 : vector<1x8x8xi8> to vector<8x8xi8>
    %c0_i8 = arith.constant 0 : i8
    %23 = vector.broadcast %c0_i8 : i8 to vector<8x8xi8>
    %24 = arith.cmpi ne, %22, %23 : vector<8x8xi8>
    %25 = arith.truncf %18 : vector<8x32xf32> to vector<8x32xbf16>
    %26 = arith.truncf %19 : vector<8x32xf32> to vector<8x32xbf16>
    %cst_22 = arith.constant dense<0.000000e+00> : vector<8x8xf32>
    %27 = tpu.matmul %25, %26, %cst_22 {dimension_numbers = #tpu.dot_dimension_numbers<[1], [1], [0], [0], [0, 0, 1, 0], [], []>} : vector<8x32xbf16>, vector<8x32xbf16>, vector<8x8xf32> -> vector<8x8xf32>
    %cst_23 = arith.constant 2.500000e-01 : f32
    %28 = vector.broadcast %cst_23 : f32 to vector<8x8xf32>
    %29 = arith.mulf %27, %28 : vector<8x8xf32>
    %cst_24 = arith.constant -9.99999984E+17 : f32
    %30 = vector.broadcast %cst_24 : f32 to vector<8x8xf32>
    %31 = arith.select %24, %30, %29 : vector<8x8xi1>, vector<8x8xf32>
    %c0_25 = arith.constant 0 : index
    %c0_26 = arith.constant 0 : index
    %c0_27 = arith.constant 0 : index
    %32 = vector.load %arg10[%c0_25, %c0_26, %c0_27] : memref<2x8x8xf32, #tpu.memory_space<vmem>>, vector<1x8x8xf32>
    %33 = vector.shape_cast %32 : vector<1x8x8xf32> to vector<8x8xf32>
    %34 = vector.shape_cast %31 : vector<8x8xf32> to vector<1x8x8xf32>
    tpu.vector_store %arg10[%c0_25, %c0_26, %c0_27], %34 {strides = array<i32>} : memref<2x8x8xf32, #tpu.memory_space<vmem>>, vector<1x8x8xf32>,
    %35 = vector.extract_strided_slice %18 {offsets = [0, 0], sizes = [8, 8], strides = [1, 1]} : vector<8x32xf32> to vector<8x8xf32>
    %36 = arith.truncf %35 : vector<8x8xf32> to vector<8x8xbf16>
    %37 = vector.extract_strided_slice %19 {offsets = [0, 0], sizes = [8, 8], strides = [1, 1]} : vector<8x32xf32> to vector<8x8xf32>
    %38 = arith.truncf %37 : vector<8x8xf32> to vector<8x8xbf16>
    %39 = vector.extract_strided_slice %20 {offsets = [0, 0], sizes = [8, 8], strides = [1, 1]} : vector<8x32xf32> to vector<8x8xf32>
    %40 = arith.truncf %39 : vector<8x8xf32> to vector<8x8xbf16>
    %cst_28 = arith.constant dense<0.000000e+00> : vector<8x8xf32>
    %41 = tpu.matmul %36, %38, %cst_28 {dimension_numbers = #tpu.dot_dimension_numbers<[1], [1], [0], [0], [0, 0, 1, 0], [], []>} : vector<8x8xbf16>, vector<8x8xbf16>, vector<8x8xf32> -> vector<8x8xf32>
    %cst_29 = arith.constant -9.99999984E+17 : f32
    %42 = vector.broadcast %cst_29 : f32 to vector<8x8xf32>
    %43 = arith.select %24, %42, %41 : vector<8x8xi1>, vector<8x8xf32>
    %cst_30 = arith.constant dense<0xFF800000> : vector<8xf32>
    %44 = vector.multi_reduction <maximumf>, %43, %cst_30 [1] : vector<8x8xf32> to vector<8xf32>
    %45 = vector.shape_cast %44 : vector<8xf32> to vector<8x1xf32>
    %46 = vector.broadcast %45 : vector<8x1xf32> to vector<8x8xf32>
    %47 = arith.subf %43, %46 : vector<8x8xf32>
    %48 = math.exp %47 : vector<8x8xf32>
    %cst_31 = arith.constant dense<0.000000e+00> : vector<8xf32>
    %49 = vector.multi_reduction <add>, %48, %cst_31 [1] : vector<8x8xf32> to vector<8xf32>
    %50 = vector.shape_cast %49 : vector<8xf32> to vector<8x1xf32>
    %51 = tpu.reciprocal %50 {approx = true} : vector<8x1xf32> -> vector<8x1xf32>
    %52 = vector.broadcast %51 : vector<8x1xf32> to vector<8x8xf32>
    %53 = arith.mulf %48, %52 : vector<8x8xf32>
    %54 = arith.truncf %53 : vector<8x8xf32> to vector<8x8xbf16>
    %cst_32 = arith.constant dense<0.000000e+00> : vector<8x8xf32>
    %55 = tpu.matmul %54, %40, %cst_32 {dimension_numbers = #tpu.dot_dimension_numbers<[1], [0], [0], [1], [0, 0, 1, 1], [], []>} : vector<8x8xbf16>, vector<8x8xbf16>, vector<8x8xf32> -> vector<8x8xf32>
    %56 = vector.extract_strided_slice %18 {offsets = [0, 8], sizes = [8, 8], strides = [1, 1]} : vector<8x32xf32> to vector<8x8xf32>
    %57 = arith.truncf %56 : vector<8x8xf32> to vector<8x8xbf16>
    %58 = vector.extract_strided_slice %19 {offsets = [0, 8], sizes = [8, 8], strides = [1, 1]} : vector<8x32xf32> to vector<8x8xf32>
    %59 = arith.truncf %58 : vector<8x8xf32> to vector<8x8xbf16>
    %60 = vector.extract_strided_slice %20 {offsets = [0, 8], sizes = [8, 8], strides = [1, 1]} : vector<8x32xf32> to vector<8x8xf32>
    %61 = arith.truncf %60 : vector<8x8xf32> to vector<8x8xbf16>
    %cst_33 = arith.constant dense<0.000000e+00> : vector<8x8xf32>
    %62 = tpu.matmul %57, %59, %cst_33 {dimension_numbers = #tpu.dot_dimension_numbers<[1], [1], [0], [0], [0, 0, 1, 0], [], []>} : vector<8x8xbf16>, vector<8x8xbf16>, vector<8x8xf32> -> vector<8x8xf32>
    %cst_34 = arith.constant -9.99999984E+17 : f32
    %63 = vector.broadcast %cst_34 : f32 to vector<8x8xf32>
    %64 = arith.select %24, %63, %62 : vector<8x8xi1>, vector<8x8xf32>
    %cst_35 = arith.constant dense<0xFF800000> : vector<8xf32>
    %65 = vector.multi_reduction <maximumf>, %64, %cst_35 [1] : vector<8x8xf32> to vector<8xf32>
    %66 = vector.shape_cast %65 : vector<8xf32> to vector<8x1xf32>
    %67 = vector.broadcast %66 : vector<8x1xf32> to vector<8x8xf32>
    %68 = arith.subf %64, %67 : vector<8x8xf32>
    %69 = math.exp %68 : vector<8x8xf32>
    %cst_36 = arith.constant dense<0.000000e+00> : vector<8xf32>
    %70 = vector.multi_reduction <add>, %69, %cst_36 [1] : vector<8x8xf32> to vector<8xf32>
    %71 = vector.shape_cast %70 : vector<8xf32> to vector<8x1xf32>
    %72 = tpu.reciprocal %71 {approx = true} : vector<8x1xf32> -> vector<8x1xf32>
    %73 = vector.broadcast %72 : vector<8x1xf32> to vector<8x8xf32>
    %74 = arith.mulf %69, %73 : vector<8x8xf32>
    %75 = arith.truncf %74 : vector<8x8xf32> to vector<8x8xbf16>
    %cst_37 = arith.constant dense<0.000000e+00> : vector<8x8xf32>
    %76 = tpu.matmul %75, %61, %cst_37 {dimension_numbers = #tpu.dot_dimension_numbers<[1], [0], [0], [1], [0, 0, 1, 1], [], []>} : vector<8x8xbf16>, vector<8x8xbf16>, vector<8x8xf32> -> vector<8x8xf32>
    %77 = vector.extract_strided_slice %18 {offsets = [0, 16], sizes = [8, 8], strides = [1, 1]} : vector<8x32xf32> to vector<8x8xf32>
    %78 = arith.truncf %77 : vector<8x8xf32> to vector<8x8xbf16>
    %79 = vector.extract_strided_slice %19 {offsets = [0, 16], sizes = [8, 8], strides = [1, 1]} : vector<8x32xf32> to vector<8x8xf32>
    %80 = arith.truncf %79 : vector<8x8xf32> to vector<8x8xbf16>
    %81 = vector.extract_strided_slice %20 {offsets = [0, 16], sizes = [8, 8], strides = [1, 1]} : vector<8x32xf32> to vector<8x8xf32>
    %82 = arith.truncf %81 : vector<8x8xf32> to vector<8x8xbf16>
    %cst_38 = arith.constant dense<0.000000e+00> : vector<8x8xf32>
    %83 = tpu.matmul %78, %80, %cst_38 {dimension_numbers = #tpu.dot_dimension_numbers<[1], [1], [0], [0], [0, 0, 1, 0], [], []>} : vector<8x8xbf16>, vector<8x8xbf16>, vector<8x8xf32> -> vector<8x8xf32>
    %cst_39 = arith.constant -9.99999984E+17 : f32
    %84 = vector.broadcast %cst_39 : f32 to vector<8x8xf32>
    %85 = arith.select %24, %84, %83 : vector<8x8xi1>, vector<8x8xf32>
    %cst_40 = arith.constant dense<0xFF800000> : vector<8xf32>
    %86 = vector.multi_reduction <maximumf>, %85, %cst_40 [1] : vector<8x8xf32> to vector<8xf32>
    %87 = vector.shape_cast %86 : vector<8xf32> to vector<8x1xf32>
    %88 = vector.broadcast %87 : vector<8x1xf32> to vector<8x8xf32>
    %89 = arith.subf %85, %88 : vector<8x8xf32>
    %90 = math.exp %89 : vector<8x8xf32>
    %cst_41 = arith.constant dense<0.000000e+00> : vector<8xf32>
    %91 = vector.multi_reduction <add>, %90, %cst_41 [1] : vector<8x8xf32> to vector<8xf32>
    %92 = vector.shape_cast %91 : vector<8xf32> to vector<8x1xf32>
    %93 = tpu.reciprocal %92 {approx = true} : vector<8x1xf32> -> vector<8x1xf32>
    %94 = vector.broadcast %93 : vector<8x1xf32> to vector<8x8xf32>
    %95 = arith.mulf %90, %94 : vector<8x8xf32>
    %96 = arith.truncf %95 : vector<8x8xf32> to vector<8x8xbf16>
    %cst_42 = arith.constant dense<0.000000e+00> : vector<8x8xf32>
    %97 = tpu.matmul %96, %82, %cst_42 {dimension_numbers = #tpu.dot_dimension_numbers<[1], [0], [0], [1], [0, 0, 1, 1], [], []>} : vector<8x8xbf16>, vector<8x8xbf16>, vector<8x8xf32> -> vector<8x8xf32>
    %98 = vector.extract_strided_slice %18 {offsets = [0, 24], sizes = [8, 8], strides = [1, 1]} : vector<8x32xf32> to vector<8x8xf32>
    %99 = arith.truncf %98 : vector<8x8xf32> to vector<8x8xbf16>
    %100 = vector.extract_strided_slice %19 {offsets = [0, 24], sizes = [8, 8], strides = [1, 1]} : vector<8x32xf32> to vector<8x8xf32>
    %101 = arith.truncf %100 : vector<8x8xf32> to vector<8x8xbf16>
    %102 = vector.extract_strided_slice %20 {offsets = [0, 24], sizes = [8, 8], strides = [1, 1]} : vector<8x32xf32> to vector<8x8xf32>
    %103 = arith.truncf %102 : vector<8x8xf32> to vector<8x8xbf16>
    %cst_43 = arith.constant dense<0.000000e+00> : vector<8x8xf32>
    %104 = tpu.matmul %99, %101, %cst_43 {dimension_numbers = #tpu.dot_dimension_numbers<[1], [1], [0], [0], [0, 0, 1, 0], [], []>} : vector<8x8xbf16>, vector<8x8xbf16>, vector<8x8xf32> -> vector<8x8xf32>
    %cst_44 = arith.constant -9.99999984E+17 : f32
    %105 = vector.broadcast %cst_44 : f32 to vector<8x8xf32>
    %106 = arith.select %24, %105, %104 : vector<8x8xi1>, vector<8x8xf32>
    %cst_45 = arith.constant dense<0xFF800000> : vector<8xf32>
    %107 = vector.multi_reduction <maximumf>, %106, %cst_45 [1] : vector<8x8xf32> to vector<8xf32>
    %108 = vector.shape_cast %107 : vector<8xf32> to vector<8x1xf32>
    %109 = vector.broadcast %108 : vector<8x1xf32> to vector<8x8xf32>
    %110 = arith.subf %106, %109 : vector<8x8xf32>
    %111 = math.exp %110 : vector<8x8xf32>
    %cst_46 = arith.constant dense<0.000000e+00> : vector<8xf32>
    %112 = vector.multi_reduction <add>, %111, %cst_46 [1] : vector<8x8xf32> to vector<8xf32>
    %113 = vector.shape_cast %112 : vector<8xf32> to vector<8x1xf32>
    %114 = tpu.reciprocal %113 {approx = true} : vector<8x1xf32> -> vector<8x1xf32>
    %115 = vector.broadcast %114 : vector<8x1xf32> to vector<8x8xf32>
    %116 = arith.mulf %111, %115 : vector<8x8xf32>
    %117 = arith.truncf %116 : vector<8x8xf32> to vector<8x8xbf16>
    %cst_47 = arith.constant dense<0.000000e+00> : vector<8x8xf32>
    %118 = tpu.matmul %117, %103, %cst_47 {dimension_numbers = #tpu.dot_dimension_numbers<[1], [0], [0], [1], [0, 0, 1, 1], [], []>} : vector<8x8xbf16>, vector<8x8xbf16>, vector<8x8xf32> -> vector<8x8xf32>
    %119 = tpu.concatenate %55, %76, %97, %118 in 1 : vector<8x8xf32>, vector<8x8xf32>, vector<8x8xf32>, vector<8x8xf32> -> vector<8x32xf32>
    %120 = arith.truncf %119 : vector<8x32xf32> to vector<8x32xbf16>
    %cst_48 = arith.constant dense<0.000000e+00> : vector<8x32xf32>
    %121 = tpu.matmul %120, %12, %cst_48 {dimension_numbers = #tpu.dot_dimension_numbers<[1], [0], [0], [1], [0, 0, 1, 1], [], []>} : vector<8x32xbf16>, vector<32x32xbf16>, vector<8x32xf32> -> vector<8x32xf32>
    %c0_49 = arith.constant 0 : index
    %c0_50 = arith.constant 0 : index
    %c0_51 = arith.constant 0 : index
    %122 = vector.load %arg9[%c0_49, %c0_50, %c0_51] : memref<2x8x32xf32, #tpu.memory_space<vmem>>, vector<1x8x32xf32>
    %123 = vector.shape_cast %122 : vector<1x8x32xf32> to vector<8x32xf32>
    %124 = vector.shape_cast %121 : vector<8x32xf32> to vector<1x8x32xf32>
    tpu.vector_store %arg9[%c0_49, %c0_50, %c0_51], %124 {strides = array<i32>} : memref<2x8x32xf32, #tpu.memory_space<vmem>>, vector<1x8x32xf32>,
    %125 = vector.extract_strided_slice %15 {offsets = [8, 0], sizes = [8, 32], strides = [1, 1]} : vector<16x32xf32> to vector<8x32xf32>
    %126 = vector.extract_strided_slice %16 {offsets = [8, 0], sizes = [8, 32], strides = [1, 1]} : vector<16x32xf32> to vector<8x32xf32>
    %127 = vector.extract_strided_slice %17 {offsets = [8, 0], sizes = [8, 32], strides = [1, 1]} : vector<16x32xf32> to vector<8x32xf32>
    %c1 = arith.constant 1 : index
    %c0_52 = arith.constant 0 : index
    %c0_53 = arith.constant 0 : index
    %128 = vector.load %arg4[%c1, %c0_52, %c0_53] : memref<2x8x8xi8, #tpu.memory_space<vmem>>, vector<1x8x8xi8>
    %129 = vector.shape_cast %128 : vector<1x8x8xi8> to vector<8x8xi8>
    %c0_i8_54 = arith.constant 0 : i8
    %130 = vector.broadcast %c0_i8_54 : i8 to vector<8x8xi8>
    %131 = arith.cmpi ne, %129, %130 : vector<8x8xi8>
    %132 = arith.truncf %125 : vector<8x32xf32> to vector<8x32xbf16>
    %133 = arith.truncf %126 : vector<8x32xf32> to vector<8x32xbf16>
    %cst_55 = arith.constant dense<0.000000e+00> : vector<8x8xf32>
    %134 = tpu.matmul %132, %133, %cst_55 {dimension_numbers = #tpu.dot_dimension_numbers<[1], [1], [0], [0], [0, 0, 1, 0], [], []>} : vector<8x32xbf16>, vector<8x32xbf16>, vector<8x8xf32> -> vector<8x8xf32>
    %cst_56 = arith.constant 2.500000e-01 : f32
    %135 = vector.broadcast %cst_56 : f32 to vector<8x8xf32>
    %136 = arith.mulf %134, %135 : vector<8x8xf32>
    %cst_57 = arith.constant -9.99999984E+17 : f32
    %137 = vector.broadcast %cst_57 : f32 to vector<8x8xf32>
    %138 = arith.select %131, %137, %136 : vector<8x8xi1>, vector<8x8xf32>
    %c1_58 = arith.constant 1 : index
    %c0_59 = arith.constant 0 : index
    %c0_60 = arith.constant 0 : index
    %139 = vector.load %arg10[%c1_58, %c0_59, %c0_60] : memref<2x8x8xf32, #tpu.memory_space<vmem>>, vector<1x8x8xf32>
    %140 = vector.shape_cast %139 : vector<1x8x8xf32> to vector<8x8xf32>
    %141 = vector.shape_cast %138 : vector<8x8xf32> to vector<1x8x8xf32>
    tpu.vector_store %arg10[%c1_58, %c0_59, %c0_60], %141 {strides = array<i32>} : memref<2x8x8xf32, #tpu.memory_space<vmem>>, vector<1x8x8xf32>,
    %142 = vector.extract_strided_slice %125 {offsets = [0, 0], sizes = [8, 8], strides = [1, 1]} : vector<8x32xf32> to vector<8x8xf32>
    %143 = arith.truncf %142 : vector<8x8xf32> to vector<8x8xbf16>
    %144 = vector.extract_strided_slice %126 {offsets = [0, 0], sizes = [8, 8], strides = [1, 1]} : vector<8x32xf32> to vector<8x8xf32>
    %145 = arith.truncf %144 : vector<8x8xf32> to vector<8x8xbf16>
    %146 = vector.extract_strided_slice %127 {offsets = [0, 0], sizes = [8, 8], strides = [1, 1]} : vector<8x32xf32> to vector<8x8xf32>
    %147 = arith.truncf %146 : vector<8x8xf32> to vector<8x8xbf16>
    %cst_61 = arith.constant dense<0.000000e+00> : vector<8x8xf32>
    %148 = tpu.matmul %143, %145, %cst_61 {dimension_numbers = #tpu.dot_dimension_numbers<[1], [1], [0], [0], [0, 0, 1, 0], [], []>} : vector<8x8xbf16>, vector<8x8xbf16>, vector<8x8xf32> -> vector<8x8xf32>
    %cst_62 = arith.constant -9.99999984E+17 : f32
    %149 = vector.broadcast %cst_62 : f32 to vector<8x8xf32>
    %150 = arith.select %131, %149, %148 : vector<8x8xi1>, vector<8x8xf32>
    %cst_63 = arith.constant dense<0xFF800000> : vector<8xf32>
    %151 = vector.multi_reduction <maximumf>, %150, %cst_63 [1] : vector<8x8xf32> to vector<8xf32>
    %152 = vector.shape_cast %151 : vector<8xf32> to vector<8x1xf32>
    %153 = vector.broadcast %152 : vector<8x1xf32> to vector<8x8xf32>
    %154 = arith.subf %150, %153 : vector<8x8xf32>
    %155 = math.exp %154 : vector<8x8xf32>
    %cst_64 = arith.constant dense<0.000000e+00> : vector<8xf32>
    %156 = vector.multi_reduction <add>, %155, %cst_64 [1] : vector<8x8xf32> to vector<8xf32>
    %157 = vector.shape_cast %156 : vector<8xf32> to vector<8x1xf32>
    %158 = tpu.reciprocal %157 {approx = true} : vector<8x1xf32> -> vector<8x1xf32>
    %159 = vector.broadcast %158 : vector<8x1xf32> to vector<8x8xf32>
    %160 = arith.mulf %155, %159 : vector<8x8xf32>
    %161 = arith.truncf %160 : vector<8x8xf32> to vector<8x8xbf16>
    %cst_65 = arith.constant dense<0.000000e+00> : vector<8x8xf32>
    %162 = tpu.matmul %161, %147, %cst_65 {dimension_numbers = #tpu.dot_dimension_numbers<[1], [0], [0], [1], [0, 0, 1, 1], [], []>} : vector<8x8xbf16>, vector<8x8xbf16>, vector<8x8xf32> -> vector<8x8xf32>
    %163 = vector.extract_strided_slice %125 {offsets = [0, 8], sizes = [8, 8], strides = [1, 1]} : vector<8x32xf32> to vector<8x8xf32>
    %164 = arith.truncf %163 : vector<8x8xf32> to vector<8x8xbf16>
    %165 = vector.extract_strided_slice %126 {offsets = [0, 8], sizes = [8, 8], strides = [1, 1]} : vector<8x32xf32> to vector<8x8xf32>
    %166 = arith.truncf %165 : vector<8x8xf32> to vector<8x8xbf16>
    %167 = vector.extract_strided_slice %127 {offsets = [0, 8], sizes = [8, 8], strides = [1, 1]} : vector<8x32xf32> to vector<8x8xf32>
    %168 = arith.truncf %167 : vector<8x8xf32> to vector<8x8xbf16>
    %cst_66 = arith.constant dense<0.000000e+00> : vector<8x8xf32>
    %169 = tpu.matmul %164, %166, %cst_66 {dimension_numbers = #tpu.dot_dimension_numbers<[1], [1], [0], [0], [0, 0, 1, 0], [], []>} : vector<8x8xbf16>, vector<8x8xbf16>, vector<8x8xf32> -> vector<8x8xf32>
    %cst_67 = arith.constant -9.99999984E+17 : f32
    %170 = vector.broadcast %cst_67 : f32 to vector<8x8xf32>
    %171 = arith.select %131, %170, %169 : vector<8x8xi1>, vector<8x8xf32>
    %cst_68 = arith.constant dense<0xFF800000> : vector<8xf32>
    %172 = vector.multi_reduction <maximumf>, %171, %cst_68 [1] : vector<8x8xf32> to vector<8xf32>
    %173 = vector.shape_cast %172 : vector<8xf32> to vector<8x1xf32>
    %174 = vector.broadcast %173 : vector<8x1xf32> to vector<8x8xf32>
    %175 = arith.subf %171, %174 : vector<8x8xf32>
    %176 = math.exp %175 : vector<8x8xf32>
    %cst_69 = arith.constant dense<0.000000e+00> : vector<8xf32>
    %177 = vector.multi_reduction <add>, %176, %cst_69 [1] : vector<8x8xf32> to vector<8xf32>
    %178 = vector.shape_cast %177 : vector<8xf32> to vector<8x1xf32>
    %179 = tpu.reciprocal %178 {approx = true} : vector<8x1xf32> -> vector<8x1xf32>
    %180 = vector.broadcast %179 : vector<8x1xf32> to vector<8x8xf32>
    %181 = arith.mulf %176, %180 : vector<8x8xf32>
    %182 = arith.truncf %181 : vector<8x8xf32> to vector<8x8xbf16>
    %cst_70 = arith.constant dense<0.000000e+00> : vector<8x8xf32>
    %183 = tpu.matmul %182, %168, %cst_70 {dimension_numbers = #tpu.dot_dimension_numbers<[1], [0], [0], [1], [0, 0, 1, 1], [], []>} : vector<8x8xbf16>, vector<8x8xbf16>, vector<8x8xf32> -> vector<8x8xf32>
    %184 = vector.extract_strided_slice %125 {offsets = [0, 16], sizes = [8, 8], strides = [1, 1]} : vector<8x32xf32> to vector<8x8xf32>
    %185 = arith.truncf %184 : vector<8x8xf32> to vector<8x8xbf16>
    %186 = vector.extract_strided_slice %126 {offsets = [0, 16], sizes = [8, 8], strides = [1, 1]} : vector<8x32xf32> to vector<8x8xf32>
    %187 = arith.truncf %186 : vector<8x8xf32> to vector<8x8xbf16>
    %188 = vector.extract_strided_slice %127 {offsets = [0, 16], sizes = [8, 8], strides = [1, 1]} : vector<8x32xf32> to vector<8x8xf32>
    %189 = arith.truncf %188 : vector<8x8xf32> to vector<8x8xbf16>
    %cst_71 = arith.constant dense<0.000000e+00> : vector<8x8xf32>
    %190 = tpu.matmul %185, %187, %cst_71 {dimension_numbers = #tpu.dot_dimension_numbers<[1], [1], [0], [0], [0, 0, 1, 0], [], []>} : vector<8x8xbf16>, vector<8x8xbf16>, vector<8x8xf32> -> vector<8x8xf32>
    %cst_72 = arith.constant -9.99999984E+17 : f32
    %191 = vector.broadcast %cst_72 : f32 to vector<8x8xf32>
    %192 = arith.select %131, %191, %190 : vector<8x8xi1>, vector<8x8xf32>
    %cst_73 = arith.constant dense<0xFF800000> : vector<8xf32>
    %193 = vector.multi_reduction <maximumf>, %192, %cst_73 [1] : vector<8x8xf32> to vector<8xf32>
    %194 = vector.shape_cast %193 : vector<8xf32> to vector<8x1xf32>
    %195 = vector.broadcast %194 : vector<8x1xf32> to vector<8x8xf32>
    %196 = arith.subf %192, %195 : vector<8x8xf32>
    %197 = math.exp %196 : vector<8x8xf32>
    %cst_74 = arith.constant dense<0.000000e+00> : vector<8xf32>
    %198 = vector.multi_reduction <add>, %197, %cst_74 [1] : vector<8x8xf32> to vector<8xf32>
    %199 = vector.shape_cast %198 : vector<8xf32> to vector<8x1xf32>
    %200 = tpu.reciprocal %199 {approx = true} : vector<8x1xf32> -> vector<8x1xf32>
    %201 = vector.broadcast %200 : vector<8x1xf32> to vector<8x8xf32>
    %202 = arith.mulf %197, %201 : vector<8x8xf32>
    %203 = arith.truncf %202 : vector<8x8xf32> to vector<8x8xbf16>
    %cst_75 = arith.constant dense<0.000000e+00> : vector<8x8xf32>
    %204 = tpu.matmul %203, %189, %cst_75 {dimension_numbers = #tpu.dot_dimension_numbers<[1], [0], [0], [1], [0, 0, 1, 1], [], []>} : vector<8x8xbf16>, vector<8x8xbf16>, vector<8x8xf32> -> vector<8x8xf32>
    %205 = vector.extract_strided_slice %125 {offsets = [0, 24], sizes = [8, 8], strides = [1, 1]} : vector<8x32xf32> to vector<8x8xf32>
    %206 = arith.truncf %205 : vector<8x8xf32> to vector<8x8xbf16>
    %207 = vector.extract_strided_slice %126 {offsets = [0, 24], sizes = [8, 8], strides = [1, 1]} : vector<8x32xf32> to vector<8x8xf32>
    %208 = arith.truncf %207 : vector<8x8xf32> to vector<8x8xbf16>
    %209 = vector.extract_strided_slice %127 {offsets = [0, 24], sizes = [8, 8], strides = [1, 1]} : vector<8x32xf32> to vector<8x8xf32>
    %210 = arith.truncf %209 : vector<8x8xf32> to vector<8x8xbf16>
    %cst_76 = arith.constant dense<0.000000e+00> : vector<8x8xf32>
    %211 = tpu.matmul %206, %208, %cst_76 {dimension_numbers = #tpu.dot_dimension_numbers<[1], [1], [0], [0], [0, 0, 1, 0], [], []>} : vector<8x8xbf16>, vector<8x8xbf16>, vector<8x8xf32> -> vector<8x8xf32>
    %cst_77 = arith.constant -9.99999984E+17 : f32
    %212 = vector.broadcast %cst_77 : f32 to vector<8x8xf32>
    %213 = arith.select %131, %212, %211 : vector<8x8xi1>, vector<8x8xf32>
    %cst_78 = arith.constant dense<0xFF800000> : vector<8xf32>
    %214 = vector.multi_reduction <maximumf>, %213, %cst_78 [1] : vector<8x8xf32> to vector<8xf32>
    %215 = vector.shape_cast %214 : vector<8xf32> to vector<8x1xf32>
    %216 = vector.broadcast %215 : vector<8x1xf32> to vector<8x8xf32>
    %217 = arith.subf %213, %216 : vector<8x8xf32>
    %218 = math.exp %217 : vector<8x8xf32>
    %cst_79 = arith.constant dense<0.000000e+00> : vector<8xf32>
    %219 = vector.multi_reduction <add>, %218, %cst_79 [1] : vector<8x8xf32> to vector<8xf32>
    %220 = vector.shape_cast %219 : vector<8xf32> to vector<8x1xf32>
    %221 = tpu.reciprocal %220 {approx = true} : vector<8x1xf32> -> vector<8x1xf32>
    %222 = vector.broadcast %221 : vector<8x1xf32> to vector<8x8xf32>
    %223 = arith.mulf %218, %222 : vector<8x8xf32>
    %224 = arith.truncf %223 : vector<8x8xf32> to vector<8x8xbf16>
    %cst_80 = arith.constant dense<0.000000e+00> : vector<8x8xf32>
    %225 = tpu.matmul %224, %210, %cst_80 {dimension_numbers = #tpu.dot_dimension_numbers<[1], [0], [0], [1], [0, 0, 1, 1], [], []>} : vector<8x8xbf16>, vector<8x8xbf16>, vector<8x8xf32> -> vector<8x8xf32>
    %226 = tpu.concatenate %162, %183, %204, %225 in 1 : vector<8x8xf32>, vector<8x8xf32>, vector<8x8xf32>, vector<8x8xf32> -> vector<8x32xf32>
    %227 = arith.truncf %226 : vector<8x32xf32> to vector<8x32xbf16>
    %cst_81 = arith.constant dense<0.000000e+00> : vector<8x32xf32>
    %228 = tpu.matmul %227, %12, %cst_81 {dimension_numbers = #tpu.dot_dimension_numbers<[1], [0], [0], [1], [0, 0, 1, 1], [], []>} : vector<8x32xbf16>, vector<32x32xbf16>, vector<8x32xf32> -> vector<8x32xf32>
    %c1_82 = arith.constant 1 : index
    %c0_83 = arith.constant 0 : index
    %c0_84 = arith.constant 0 : index
    %229 = vector.load %arg9[%c1_82, %c0_83, %c0_84] : memref<2x8x32xf32, #tpu.memory_space<vmem>>, vector<1x8x32xf32>
    %230 = vector.shape_cast %229 : vector<1x8x32xf32> to vector<8x32xf32>
    %231 = vector.shape_cast %228 : vector<8x32xf32> to vector<1x8x32xf32>
    tpu.vector_store %arg9[%c1_82, %c0_83, %c0_84], %231 {strides = array<i32>} : memref<2x8x32xf32, #tpu.memory_space<vmem>>, vector<1x8x32xf32>,
    return
  }
  func.func @transform_0(%arg0: i32) -> (i32, i32, i32) {
    %c0_i32 = arith.constant 0 : i32
    %c0_i32_0 = arith.constant 0 : i32
    %c0_i32_1 = arith.constant 0 : i32
    return %arg0, %c0_i32, %c0_i32_0 : i32, i32, i32
  }
  func.func @transform_1(%arg0: i32) -> (i32, i32, i32) {
    %c0_i32 = arith.constant 0 : i32
    %c0_i32_0 = arith.constant 0 : i32
    %c0_i32_1 = arith.constant 0 : i32
    return %arg0, %c0_i32, %c0_i32_0 : i32, i32, i32
  }
  func.func @transform_2(%arg0: i32) -> (i32, i32, i32) {
    %c0_i32 = arith.constant 0 : i32
    %c0_i32_0 = arith.constant 0 : i32
    %c0_i32_1 = arith.constant 0 : i32
    return %arg0, %c0_i32, %c0_i32_0 : i32, i32, i32
  }
  func.func @transform_3(%arg0: i32) -> (i32, i32, i32) {
    %c0_i32 = arith.constant 0 : i32
    %c0_i32_0 = arith.constant 0 : i32
    %c0_i32_1 = arith.constant 0 : i32
    return %arg0, %c0_i32, %c0_i32_0 : i32, i32, i32
  }
  func.func @transform_4(%arg0: i32) -> (i32, i32) {
    %c0_i32 = arith.constant 0 : i32
    %c0_i32_0 = arith.constant 0 : i32
    %c0_i32_1 = arith.constant 0 : i32
    return %c0_i32, %c0_i32_0 : i32, i32
  }
  func.func @transform_5(%arg0: i32) -> (i32, i32) {
    %c0_i32 = arith.constant 0 : i32
    %c0_i32_0 = arith.constant 0 : i32
    %c0_i32_1 = arith.constant 0 : i32
    return %c0_i32, %c0_i32_0 : i32, i32
  }
  func.func @transform_6(%arg0: i32) -> (i32, i32) {
    %c0_i32 = arith.constant 0 : i32
    %c0_i32_0 = arith.constant 0 : i32
    %c0_i32_1 = arith.constant 0 : i32
    return %c0_i32, %c0_i32_0 : i32, i32
  }
  func.func @transform_7(%arg0: i32) -> (i32, i32) {
    %c0_i32 = arith.constant 0 : i32
    %c0_i32_0 = arith.constant 0 : i32
    %c0_i32_1 = arith.constant 0 : i32
    return %c0_i32, %c0_i32_0 : i32, i32
  }
  func.func @transform_8(%arg0: i32) -> (i32, i32, i32) {
    %c0_i32 = arith.constant 0 : i32
    %c0_i32_0 = arith.constant 0 : i32
    %c0_i32_1 = arith.constant 0 : i32
    return %arg0, %c0_i32, %c0_i32_0 : i32, i32, i32
  }
  func.func @transform_9(%arg0: i32) -> (i32, i32, i32) {
    %c0_i32 = arith.constant 0 : i32
    %c0_i32_0 = arith.constant 0 : i32
    %c0_i32_1 = arith.constant 0 : i32
    return %arg0, %c0_i32, %c0_i32_0 : i32, i32, i32
  }
}

</mosaic_0001>

<llo_original>
// kernel: tpu_custom_call.1
$region0: #{tpu_custom_call.1}
  #allocation0 [shape = 'u32[]', space=smem, size = 0x4, offset = 0x4, fixed_abs, tag = 'smem constant byte address 0x4 - core index']
  #allocation1 [shape = 'u32[144,128]{1,0:T(1,128)}', space=vmem, size = 0x12000, scoped, tag = 'internal scratch']
  %s0 = inlined_call_operand.hbm [shape: f32[2,8,32], index: 0, kind: input, shape index: {}]
  %s1 = inlined_call_operand.hbm [shape: f32[2,8,32], index: 1, kind: input, shape index: {}]
  %s2 = inlined_call_operand.hbm [shape: f32[2,8,32], index: 2, kind: input, shape index: {}]
  %s3 = inlined_call_operand.hbm [shape: s8[2,8,8], index: 3, kind: input, shape index: {}]
  %s4 = inlined_call_operand.hbm [shape: bf16[32,32], index: 4, kind: input, shape index: {}]
  %s5 = inlined_call_operand.hbm [shape: bf16[32,32], index: 5, kind: input, shape index: {}]
  %s6 = inlined_call_operand.hbm [shape: bf16[32,32], index: 6, kind: input, shape index: {}]
  %s7 = inlined_call_operand.hbm [shape: bf16[32,32], index: 7, kind: input, shape index: {}]
  %s8 = inlined_call_operand.hbm [shape: f32[2,8,32], index: 8, kind: output, shape index: {0}]
  %s9 = inlined_call_operand.hbm [shape: f32[2,8,8], index: 9, kind: output, shape index: {1}]
  %10 = xla_tuple %s8, %s9
  %s11 = sld [smem:[#allocation0]]
  $region82: #{tpu_custom_call.1} parent=0
    _
  %s13 = ssub.s32 1, %s11
  %s14 = scalar_select 0, %s13, %s11
  $region1: #{tpu_custom_call.1} parent=0
    #allocation2 [shape = 'u8[8192]{0}', space=vmem, size = 0x2000, scoped, tag = 'input window, operand 0, single buffered']
    #allocation3 [shape = 's32[1]{0}', space=sflag, size = 0x4, scoped, tag = 'scoped memory for tpu_custom_call.1']
    #allocation4 [shape = 's32[1]{0}', space=sflag, size = 0x4, scoped, tag = 'scoped memory for tpu_custom_call.1']
    #allocation5 [shape = 'u8[8192]{0}', space=vmem, size = 0x2000, scoped, tag = 'input window, operand 1, single buffered']
    #allocation6 [shape = 's32[1]{0}', space=sflag, size = 0x4, scoped, tag = 'scoped memory for tpu_custom_call.1']
    #allocation7 [shape = 'u8[8192]{0}', space=vmem, size = 0x2000, scoped, tag = 'input window, operand 2, single buffered']
    #allocation8 [shape = 'u8[2048]{0}', space=vmem, size = 0x800, scoped, tag = 'input window, operand 3, single buffered']
    #allocation9 [shape = 's32[1]{0}', space=sflag, size = 0x4, scoped, tag = 'scoped memory for tpu_custom_call.1']
    #allocation10 [shape = 'u8[8192]{0}', space=vmem, size = 0x2000, scoped, tag = 'input window, operand 4, single buffered']
    #allocation11 [shape = 'u8[8192]{0}', space=vmem, size = 0x2000, scoped, tag = 'input window, operand 5, single buffered']
    #allocation12 [shape = 's32[1]{0}', space=sflag, size = 0x4, scoped, tag = 'scoped memory for tpu_custom_call.1']
    #allocation13 [shape = 'u8[8192]{0}', space=vmem, size = 0x2000, scoped, tag = 'input window, operand 6, single buffered']
    #allocation14 [shape = 'u8[8192]{0}', space=vmem, size = 0x2000, scoped, tag = 'input window, operand 7, single buffered']
    #allocation15 [shape = 's32[1]{0}', space=sflag, size = 0x4, scoped, tag = 'scoped memory for tpu_custom_call.1']
    #allocation16 [shape = 'u8[8192]{0}', space=vmem, size = 0x2000, scoped, tag = 'output window, operand 0, single buffered']
    #allocation17 [shape = 'u8[8192]{0}', space=vmem, size = 0x2000, scoped, tag = 'output window, operand 1, single buffered']
    #allocation18 [shape = 's32[1]{0}', space=sflag, size = 0x4, scoped, tag = 'scoped memory for tpu_custom_call.1']
    %15 = vsyncpa [#allocation3], 0
    %16 = vsyncpa [#allocation6], 0
    %17 = vsyncpa [#allocation9], 0
    %18 = vsyncpa [#allocation12], 0
    %19 = vsyncpa [#allocation15], 0
    %20 = vsyncpa [#allocation4], 0
    %21 = vsyncpa [#allocation18], 0
    // Predicated region
    $region2: #{tpu_custom_call.1} parent=1 // pred_check
      _
    $region3: #{tpu_custom_call.1} parent=1 // pred_check_branch
      %23 = sbr.rel (0) target = $region5
    $region4: #{tpu_custom_call.1} parent=1 // pred_region
      %s25 = ssub.s32 256, 256
      %26 = vsyncadd [#allocation3], %s25
      %s27 = sshll.u32 [#allocation2], 4
      %s28 = int_to_ptr.vmem [resolvable:$true] %s27
      %33 = dma.hbm_to_vmem [thread:$0]  %s0, 256, %s28, [#allocation3], 128, 128, 8
    $region5: #{tpu_custom_call.1} parent=1 // pred_fallthru
      _
    // Predicated region
    $region6: #{tpu_custom_call.1} parent=1 // pred_check
      _
    $region7: #{tpu_custom_call.1} parent=1 // pred_check_branch
      %35 = sbr.rel (0) target = $region9
    $region8: #{tpu_custom_call.1} parent=1 // pred_region
      %s37 = ssub.s32 256, 256
      %38 = vsyncadd [#allocation6], %s37
      %s39 = sshll.u32 [#allocation5], 4
      %s40 = int_to_ptr.vmem [resolvable:$true] %s39
      %45 = dma.hbm_to_vmem [thread:$0]  %s1, 256, %s40, [#allocation6], 128, 128, 8
    $region9: #{tpu_custom_call.1} parent=1 // pred_fallthru
      _
    // Predicated region
    $region10: #{tpu_custom_call.1} parent=1 // pred_check
      _
    $region11: #{tpu_custom_call.1} parent=1 // pred_check_branch
      %47 = sbr.rel (0) target = $region13
    $region12: #{tpu_custom_call.1} parent=1 // pred_region
      %s49 = ssub.s32 256, 256
      %50 = vsyncadd [#allocation6], %s49
      %s51 = sshll.u32 [#allocation7], 4
      %s52 = int_to_ptr.vmem [resolvable:$true] %s51
      %57 = dma.hbm_to_vmem [thread:$0]  %s2, 256, %s52, [#allocation6], 128, 128, 8
    $region13: #{tpu_custom_call.1} parent=1 // pred_fallthru
      _
    // Predicated region
    $region14: #{tpu_custom_call.1} parent=1 // pred_check
      _
    $region15: #{tpu_custom_call.1} parent=1 // pred_check_branch
      %59 = sbr.rel (0) target = $region17
    $region16: #{tpu_custom_call.1} parent=1 // pred_region
      %s61 = ssub.s32 64, 64
      %62 = vsyncadd [#allocation9], %s61
      %s63 = sshll.u32 [#allocation8], 4
      %s64 = int_to_ptr.vmem [resolvable:$true] %s63
      %69 = dma.hbm_to_vmem [thread:$0]  %s3, 64, %s64, [#allocation9], 32, 32, 2
    $region17: #{tpu_custom_call.1} parent=1 // pred_fallthru
      _
    // Predicated region
    $region18: #{tpu_custom_call.1} parent=1 // pred_check
      _
    $region19: #{tpu_custom_call.1} parent=1 // pred_check_branch
      %71 = sbr.rel (0) target = $region21
    $region20: #{tpu_custom_call.1} parent=1 // pred_region
      %s73 = ssub.s32 256, 256
      %74 = vsyncadd [#allocation9], %s73
      %s75 = sshll.u32 [#allocation10], 4
      %s76 = int_to_ptr.vmem [resolvable:$true] %s75
      %81 = dma.hbm_to_vmem [thread:$0]  %s4, 256, %s76, [#allocation9], 64, 64, 4
    $region21: #{tpu_custom_call.1} parent=1 // pred_fallthru
      _
    // Predicated region
    $region22: #{tpu_custom_call.1} parent=1 // pred_check
      _
    $region23: #{tpu_custom_call.1} parent=1 // pred_check_branch
      %83 = sbr.rel (0) target = $region25
    $region24: #{tpu_custom_call.1} parent=1 // pred_region
      %s85 = ssub.s32 256, 256
      %86 = vsyncadd [#allocation12], %s85
      %s87 = sshll.u32 [#allocation11], 4
      %s88 = int_to_ptr.vmem [resolvable:$true] %s87
      %93 = dma.hbm_to_vmem [thread:$0]  %s5, 256, %s88, [#allocation12], 64, 64, 4
    $region25: #{tpu_custom_call.1} parent=1 // pred_fallthru
      _
    // Predicated region
    $region26: #{tpu_custom_call.1} parent=1 // pred_check
      _
    $region27: #{tpu_custom_call.1} parent=1 // pred_check_branch
      %95 = sbr.rel (0) target = $region29
    $region28: #{tpu_custom_call.1} parent=1 // pred_region
      %s97 = ssub.s32 256, 256
      %98 = vsyncadd [#allocation12], %s97
      %s99 = sshll.u32 [#allocation13], 4
      %s100 = int_to_ptr.vmem [resolvable:$true] %s99
      %105 = dma.hbm_to_vmem [thread:$0]  %s6, 256, %s100, [#allocation12], 64, 64, 4
    $region29: #{tpu_custom_call.1} parent=1 // pred_fallthru
      _
    // Predicated region
    $region30: #{tpu_custom_call.1} parent=1 // pred_check
      _
    $region31: #{tpu_custom_call.1} parent=1 // pred_check_branch
      %107 = sbr.rel (0) target = $region33
    $region32: #{tpu_custom_call.1} parent=1 // pred_region
      %s109 = ssub.s32 256, 256
      %110 = vsyncadd [#allocation15], %s109
      %s111 = sshll.u32 [#allocation14], 4
      %s112 = int_to_ptr.vmem [resolvable:$true] %s111
      %117 = dma.hbm_to_vmem [thread:$0]  %s7, 256, %s112, [#allocation15], 64, 64, 4
    $region33: #{tpu_custom_call.1} parent=1 // pred_fallthru
      _
    // Predicated region
    $region34: #{tpu_custom_call.1} parent=1 // pred_check
      _
    $region35: #{tpu_custom_call.1} parent=1 // pred_check_branch
      %119 = sbr.rel (0) target = $region37
    $region36: #{tpu_custom_call.1} parent=1 // pred_region
      %120 = dma.done [#allocation3], 256
    $region37: #{tpu_custom_call.1} parent=1 // pred_fallthru
      _
    // Predicated region
    $region38: #{tpu_custom_call.1} parent=1 // pred_check
      _
    $region39: #{tpu_custom_call.1} parent=1 // pred_check_branch
      %122 = sbr.rel (0) target = $region41
    $region40: #{tpu_custom_call.1} parent=1 // pred_region
      %123 = dma.done [#allocation6], 256
    $region41: #{tpu_custom_call.1} parent=1 // pred_fallthru
      _
    // Predicated region
    $region42: #{tpu_custom_call.1} parent=1 // pred_check
      _
    $region43: #{tpu_custom_call.1} parent=1 // pred_check_branch
      %125 = sbr.rel (0) target = $region45
    $region44: #{tpu_custom_call.1} parent=1 // pred_region
      %126 = dma.done [#allocation6], 256
    $region45: #{tpu_custom_call.1} parent=1 // pred_fallthru
      _
    // Predicated region
    $region46: #{tpu_custom_call.1} parent=1 // pred_check
      _
    $region47: #{tpu_custom_call.1} parent=1 // pred_check_branch
      %128 = sbr.rel (0) target = $region49
    $region48: #{tpu_custom_call.1} parent=1 // pred_region
      %129 = dma.done [#allocation9], 64
    $region49: #{tpu_custom_call.1} parent=1 // pred_fallthru
      _
    // Predicated region
    $region50: #{tpu_custom_call.1} parent=1 // pred_check
      _
    $region51: #{tpu_custom_call.1} parent=1 // pred_check_branch
      %131 = sbr.rel (0) target = $region53
    $region52: #{tpu_custom_call.1} parent=1 // pred_region
      %132 = dma.done [#allocation9], 256
    $region53: #{tpu_custom_call.1} parent=1 // pred_fallthru
      _
    // Predicated region
    $region54: #{tpu_custom_call.1} parent=1 // pred_check
      _
    $region55: #{tpu_custom_call.1} parent=1 // pred_check_branch
      %134 = sbr.rel (0) target = $region57
    $region56: #{tpu_custom_call.1} parent=1 // pred_region
      %135 = dma.done [#allocation12], 256
    $region57: #{tpu_custom_call.1} parent=1 // pred_fallthru
      _
    // Predicated region
    $region58: #{tpu_custom_call.1} parent=1 // pred_check
      _
    $region59: #{tpu_custom_call.1} parent=1 // pred_check_branch
      %137 = sbr.rel (0) target = $region61
    $region60: #{tpu_custom_call.1} parent=1 // pred_region
      %138 = dma.done [#allocation12], 256
    $region61: #{tpu_custom_call.1} parent=1 // pred_fallthru
      _
    // Predicated region
    $region62: #{tpu_custom_call.1} parent=1 // pred_check
      _
    $region63: #{tpu_custom_call.1} parent=1 // pred_check_branch
      %140 = sbr.rel (0) target = $region65
    $region64: #{tpu_custom_call.1} parent=1 // pred_region
      %141 = dma.done [#allocation15], 256
    $region65: #{tpu_custom_call.1} parent=1 // pred_fallthru
      _
    %v145 = vld [vmem:[#allocation2] sm:$0xff]
    %v146 = vld [vmem:[#allocation2 + $0x8] sm:$0xff]
    %v147 = vpack.c.bf16 %v146, %v145
    %v148 = vld [vmem:[#allocation5] sm:$0xff]
    %v149 = vld [vmem:[#allocation5 + $0x8] sm:$0xff]
    %v150 = vpack.c.bf16 %v149, %v148
    %v151 = vld [vmem:[#allocation7] sm:$0xff]
    %v152 = vld [vmem:[#allocation7 + $0x8] sm:$0xff]
    %v153 = vpack.c.bf16 %v152, %v151
    %v154 = vld [vmem:[#allocation10] sm:$0xf]
    %v155 = vld [vmem:[#allocation10 + $0x4] sm:$0xf]
    %v156 = vld [vmem:[#allocation10 + $0x8] sm:$0xf]
    %v157 = vld [vmem:[#allocation10 + $0xc] sm:$0xf]
    %v158 = vld [vmem:[#allocation11] sm:$0xf]
    %v159 = vld [vmem:[#allocation11 + $0x4] sm:$0xf]
    %v160 = vld [vmem:[#allocation11 + $0x8] sm:$0xf]
    %v161 = vld [vmem:[#allocation11 + $0xc] sm:$0xf]
    %v162 = vld [vmem:[#allocation13] sm:$0xf]
    %v163 = vld [vmem:[#allocation13 + $0x4] sm:$0xf]
    %v164 = vld [vmem:[#allocation13 + $0x8] sm:$0xf]
    %v165 = vld [vmem:[#allocation13 + $0xc] sm:$0xf]
    %v166 = vld [vmem:[#allocation14] sm:$0xf]
    %v167 = vld [vmem:[#allocation14 + $0x4] sm:$0xf]
    %v168 = vld [vmem:[#allocation14 + $0x8] sm:$0xf]
    %v169 = vld [vmem:[#allocation14 + $0xc] sm:$0xf]
    %v174 = vunpack.c.l.b16 %v154
    %v175 = vunpack.c.l.b16 %v155
    %v176 = vunpack.c.l.b16 %v156
    %v177 = vunpack.c.l.b16 %v157
    %v178 = vpack.c.b16 %v175, %v174
    %v179 = vpack.c.b16 %v177, %v176
    %vm182 = vcmask 261120
    %v184 = vsel %vm182, %v147, 0
    %186 = vmatprep.subr.bf16.mxu0 0
    %187 = vmatpush1.bf16.msra.mxu0 %v178
    %188 = vmatprep.subr.bf16.mxu0 0
    %189 = vmatpush1.bf16.msra.mxu0 %v179
    %190 = vmatprep.subr.bf16.mxu0 0
    %191 = vmatpush1.bf16.msra.mxu0 0
    %192 = vmatprep.subr.bf16.mxu0 0
    %193 = vmatpush1.bf16.msra.mxu0 0
    %194 = vmatprep.subr.bf16.mxu0 0
    %195 = vmatpush1.bf16.msra.mxu0 0
    %196 = vmatprep.subr.bf16.mxu0 0
    %197 = vmatpush1.bf16.msra.mxu0 0
    %198 = vmatprep.subr.bf16.mxu0 0
    %199 = vmatpush1.bf16.msra.mxu0 0
    %200 = vmatprep.subr.bf16.mxu0 0
    %201 = vmatpush1.bf16.msra.mxu0 0
    %202 = vmatprep.subr.bf16.mxu0 0
    %203 = vmatpush1.bf16.msra.mxu0 0
    %204 = vmatprep.subr.bf16.mxu0 0
    %205 = vmatpush1.bf16.msra.mxu0 0
    %206 = vmatprep.subr.bf16.mxu0 0
    %207 = vmatpush1.bf16.msra.mxu0 0
    %208 = vmatprep.subr.bf16.mxu0 0
    %209 = vmatpush1.bf16.msra.mxu0 0
    %210 = vmatprep.subr.bf16.mxu0 0
    %211 = vmatpush1.bf16.msra.mxu0 0
    %212 = vmatprep.subr.bf16.mxu0 0
    %213 = vmatpush1.bf16.msra.mxu0 0
    %214 = vmatprep.subr.bf16.mxu0 0
    %215 = vmatpush1.bf16.msra.mxu0 0
    %216 = vmatprep.subr.bf16.mxu0 0
    %217 = vmatpush1.bf16.msra.mxu0 0
    %218 = vmatprep.mubr.bf16.mxu0 0
    %219 = vmatmul.mubr.bf16.gmra.mrb[0].mxu0 %v184
    %v220 = vpop.f32.mrb[0].mxu0
    %v221 = vadd.f32 0.0, %v220
    %v222 = vpop.f32.mrb[0].mxu0
    %v223 = vpop.f32.mrb[0].mxu0
    %v224 = vadd.f32 0.0, %v223
    %v225 = vpop.f32.mrb[0].mxu0
    %226 = vdwg.mxu0
    %v227 = vmul.f32 %v221, 0.35355338
    %v228 = vmul.f32 %v224, 0.35355338
    %v233 = vunpack.c.l.b16 %v158
    %v234 = vunpack.c.l.b16 %v159
    %v235 = vunpack.c.l.b16 %v160
    %v236 = vunpack.c.l.b16 %v161
    %v237 = vpack.c.b16 %v234, %v233
    %v238 = vpack.c.b16 %v236, %v235
    %v242 = vsel %vm182, %v150, 0
    %244 = vmatprep.subr.bf16.mxu0 0
    %245 = vmatpush1.bf16.msra.mxu0 %v237
    %246 = vmatprep.subr.bf16.mxu0 0
    %247 = vmatpush1.bf16.msra.mxu0 %v238
    %248 = vmatprep.subr.bf16.mxu0 0
    %249 = vmatpush1.bf16.msra.mxu0 0
    %250 = vmatprep.subr.bf16.mxu0 0
    %251 = vmatpush1.bf16.msra.mxu0 0
    %252 = vmatprep.subr.bf16.mxu0 0
    %253 = vmatpush1.bf16.msra.mxu0 0
    %254 = vmatprep.subr.bf16.mxu0 0
    %255 = vmatpush1.bf16.msra.mxu0 0
    %256 = vmatprep.subr.bf16.mxu0 0
    %257 = vmatpush1.bf16.msra.mxu0 0
    %258 = vmatprep.subr.bf16.mxu0 0
    %259 = vmatpush1.bf16.msra.mxu0 0
    %260 = vmatprep.subr.bf16.mxu0 0
    %261 = vmatpush1.bf16.msra.mxu0 0
    %262 = vmatprep.subr.bf16.mxu0 0
    %263 = vmatpush1.bf16.msra.mxu0 0
    %264 = vmatprep.subr.bf16.mxu0 0
    %265 = vmatpush1.bf16.msra.mxu0 0
    %266 = vmatprep.subr.bf16.mxu0 0
    %267 = vmatpush1.bf16.msra.mxu0 0
    %268 = vmatprep.subr.bf16.mxu0 0
    %269 = vmatpush1.bf16.msra.mxu0 0
    %270 = vmatprep.subr.bf16.mxu0 0
    %271 = vmatpush1.bf16.msra.mxu0 0
    %272 = vmatprep.subr.bf16.mxu0 0
    %273 = vmatpush1.bf16.msra.mxu0 0
    %274 = vmatprep.subr.bf16.mxu0 0
    %275 = vmatpush1.bf16.msra.mxu0 0
    %276 = vmatprep.mubr.bf16.mxu0 0
    %277 = vmatmul.mubr.bf16.gmra.mrb[0].mxu0 %v242
    %v278 = vpop.f32.mrb[0].mxu0
    %v279 = vadd.f32 0.0, %v278
    %v280 = vpop.f32.mrb[0].mxu0
    %v281 = vpop.f32.mrb[0].mxu0
    %v282 = vadd.f32 0.0, %v281
    %v283 = vpop.f32.mrb[0].mxu0
    %284 = vdwg.mxu0
    %v289 = vunpack.c.l.b16 %v162
    %v290 = vunpack.c.l.b16 %v163
    %v291 = vunpack.c.l.b16 %v164
    %v292 = vunpack.c.l.b16 %v165
    %v293 = vpack.c.b16 %v290, %v289
    %v294 = vpack.c.b16 %v292, %v291
    %v298 = vsel %vm182, %v153, 0
    %300 = vmatprep.subr.bf16.mxu0 0
    %301 = vmatpush1.bf16.msra.mxu0 %v293
    %302 = vmatprep.subr.bf16.mxu0 0
    %303 = vmatpush1.bf16.msra.mxu0 %v294
    %304 = vmatprep.subr.bf16.mxu0 0
    %305 = vmatpush1.bf16.msra.mxu0 0
    %306 = vmatprep.subr.bf16.mxu0 0
    %307 = vmatpush1.bf16.msra.mxu0 0
    %308 = vmatprep.subr.bf16.mxu0 0
    %309 = vmatpush1.bf16.msra.mxu0 0
    %310 = vmatprep.subr.bf16.mxu0 0
    %311 = vmatpush1.bf16.msra.mxu0 0
    %312 = vmatprep.subr.bf16.mxu0 0
    %313 = vmatpush1.bf16.msra.mxu0 0
    %314 = vmatprep.subr.bf16.mxu0 0
    %315 = vmatpush1.bf16.msra.mxu0 0
    %316 = vmatprep.subr.bf16.mxu0 0
    %317 = vmatpush1.bf16.msra.mxu0 0
    %318 = vmatprep.subr.bf16.mxu0 0
    %319 = vmatpush1.bf16.msra.mxu0 0
    %320 = vmatprep.subr.bf16.mxu0 0
    %321 = vmatpush1.bf16.msra.mxu0 0
    %322 = vmatprep.subr.bf16.mxu0 0
    %323 = vmatpush1.bf16.msra.mxu0 0
    %324 = vmatprep.subr.bf16.mxu0 0
    %325 = vmatpush1.bf16.msra.mxu0 0
    %326 = vmatprep.subr.bf16.mxu0 0
    %327 = vmatpush1.bf16.msra.mxu0 0
    %328 = vmatprep.subr.bf16.mxu0 0
    %329 = vmatpush1.bf16.msra.mxu0 0
    %330 = vmatprep.subr.bf16.mxu0 0
    %331 = vmatpush1.bf16.msra.mxu0 0
    %332 = vmatprep.mubr.bf16.mxu0 0
    %333 = vmatmul.mubr.bf16.gmra.mrb[0].mxu0 %v298
    %v334 = vpop.f32.mrb[0].mxu0
    %v335 = vadd.f32 0.0, %v334
    %v336 = vpop.f32.mrb[0].mxu0
    %v337 = vpop.f32.mrb[0].mxu0
    %v338 = vadd.f32 0.0, %v337
    %v339 = vpop.f32.mrb[0].mxu0
    %340 = vdwg.mxu0
    %v341 = vld [vmem:[#allocation8] sm:$0x3]
    %vm342 = vnez %v341
    %v343 = vpack.c.bf16 %v227, %v227
    %v344 = vpack.c.bf16 %v279, %v279
    %v346 = vsel %vm182, %v343, 0
    %v349 = vsel %vm182, %v344, 0
    %351 = vmatprep.subr.bf16.mxu0 0
    %352 = vmatpush1.bf16.xpose.msra.mxu0 %v349
    %353 = vmatprep.subr.bf16.mxu0 0
    %354 = vmatpush1.bf16.xpose.msra.mxu0 0
    %355 = vmatprep.subr.bf16.mxu0 0
    %356 = vmatpush1.bf16.xpose.msra.mxu0 0
    %357 = vmatprep.subr.bf16.mxu0 0
    %358 = vmatpush1.bf16.xpose.msra.mxu0 0
    %359 = vmatprep.subr.bf16.mxu0 0
    %360 = vmatpush1.bf16.xpose.msra.mxu0 0
    %361 = vmatprep.subr.bf16.mxu0 0
    %362 = vmatpush1.bf16.xpose.msra.mxu0 0
    %363 = vmatprep.subr.bf16.mxu0 0
    %364 = vmatpush1.bf16.xpose.msra.mxu0 0
    %365 = vmatprep.subr.bf16.mxu0 0
    %366 = vmatpush1.bf16.xpose.msra.mxu0 0
    %367 = vmatprep.subr.bf16.mxu0 0
    %368 = vmatpush1.bf16.xpose.msra.mxu0 0
    %369 = vmatprep.subr.bf16.mxu0 0
    %370 = vmatpush1.bf16.xpose.msra.mxu0 0
    %371 = vmatprep.subr.bf16.mxu0 0
    %372 = vmatpush1.bf16.xpose.msra.mxu0 0
    %373 = vmatprep.subr.bf16.mxu0 0
    %374 = vmatpush1.bf16.xpose.msra.mxu0 0
    %375 = vmatprep.subr.bf16.mxu0 0
    %376 = vmatpush1.bf16.xpose.msra.mxu0 0
    %377 = vmatprep.subr.bf16.mxu0 0
    %378 = vmatpush1.bf16.xpose.msra.mxu0 0
    %379 = vmatprep.subr.bf16.mxu0 0
    %380 = vmatpush1.bf16.xpose.msra.mxu0 0
    %381 = vmatprep.subr.bf16.mxu0 0
    %382 = vmatpush1.bf16.xpose.msra.mxu0 0
    %383 = vmatprep.mubr.bf16.mxu0 0
    %384 = vmatmul.mubr.bf16.gmra.mrb[0].mxu0 %v346
    %v385 = vpop.f32.mrb[0].mxu0
    %v386 = vadd.f32 0.0, %v385
    %v387 = vpop.f32.mrb[0].mxu0
    %v388 = vpop.f32.mrb[0].mxu0
    %v389 = vpop.f32.mrb[0].mxu0
    %390 = vdwg.mxu0
    %v391 = vmul.f32 %v386, 0.25
    %v392 = vsel %vm342, 16843009, 0
    %v393 = vunpack.c.0.s8 %v392
    %vm394 = vcmp.ne.s32.totalorder %v393, 0
    %v395 = vsel %vm394, -1e+18, %v391
    %vm396 = vcmask 64512
    %397 = vst.msk [vmem:[#allocation17] sm:$0xff] %vm396, %v395
    %v398 = vpack.c.bf16 %v335, %v335
    %v399 = vsel %vm396, %v343, 0
    %v401 = vsel %vm396, %v344, 0
    %403 = vmatprep.subr.bf16.mxu0 0
    %404 = vmatpush1.bf16.xpose.msra.mxu0 %v401
    %405 = vmatprep.subr.bf16.mxu0 0
    %406 = vmatpush1.bf16.xpose.msra.mxu0 0
    %407 = vmatprep.subr.bf16.mxu0 0
    %408 = vmatpush1.bf16.xpose.msra.mxu0 0
    %409 = vmatprep.subr.bf16.mxu0 0
    %410 = vmatpush1.bf16.xpose.msra.mxu0 0
    %411 = vmatprep.subr.bf16.mxu0 0
    %412 = vmatpush1.bf16.xpose.msra.mxu0 0
    %413 = vmatprep.subr.bf16.mxu0 0
    %414 = vmatpush1.bf16.xpose.msra.mxu0 0
    %415 = vmatprep.subr.bf16.mxu0 0
    %416 = vmatpush1.bf16.xpose.msra.mxu0 0
    %417 = vmatprep.subr.bf16.mxu0 0
    %418 = vmatpush1.bf16.xpose.msra.mxu0 0
    %419 = vmatprep.subr.bf16.mxu0 0
    %420 = vmatpush1.bf16.xpose.msra.mxu0 0
    %421 = vmatprep.subr.bf16.mxu0 0
    %422 = vmatpush1.bf16.xpose.msra.mxu0 0
    %423 = vmatprep.subr.bf16.mxu0 0
    %424 = vmatpush1.bf16.xpose.msra.mxu0 0
    %425 = vmatprep.subr.bf16.mxu0 0
    %426 = vmatpush1.bf16.xpose.msra.mxu0 0
    %427 = vmatprep.subr.bf16.mxu0 0
    %428 = vmatpush1.bf16.xpose.msra.mxu0 0
    %429 = vmatprep.subr.bf16.mxu0 0
    %430 = vmatpush1.bf16.xpose.msra.mxu0 0
    %431 = vmatprep.subr.bf16.mxu0 0
    %432 = vmatpush1.bf16.xpose.msra.mxu0 0
    %433 = vmatprep.subr.bf16.mxu0 0
    %434 = vmatpush1.bf16.xpose.msra.mxu0 0
    %435 = vmatprep.mubr.bf16.mxu0 0
    %436 = vmatmul.mubr.bf16.gmra.mrb[0].mxu0 %v399
    %v437 = vpop.f32.mrb[0].mxu0
    %v438 = vadd.f32 0.0, %v437
    %v439 = vpop.f32.mrb[0].mxu0
    %v440 = vpop.f32.mrb[0].mxu0
    %v441 = vpop.f32.mrb[0].mxu0
    %442 = vdwg.mxu0
    %v443 = vsel %vm394, -1e+18, %v438
    %v444 = vsel %vm396, %v443, -inf
    %445 = vmax.xlane.f32.xlu0 %v444
    %v446 = vpop.xlane.xlu0 %445
    %v447 = vsub.f32 %v443, %v446
    %v448 = vmul.f32 %v447, 1.442695
    %v449 = vpow.pop %v448
    %v450 = vsel %vm396, %v449, 0.0
    %451 = vadd.xlane.f32.xlu0 %v450
    %v452 = vpop.xlane.xlu0 %451
    %v453 = vrcp.pop %v452
    %v454 = vmul.f32 %v449, %v453
    %v455 = vpack.c.bf16 %v454, %v454
    %v457 = vsel %vm396, %v455, 0
    %vm459 = vcmask 1043456
    %v461 = vsel %vm459, %v398, 0
    %463 = vmatprep.subr.bf16.mxu0 0
    %464 = vmatpush1.bf16.msra.mxu0 %v461
    %465 = vmatprep.subr.bf16.mxu0 0
    %466 = vmatpush1.bf16.msra.mxu0 0
    %467 = vmatprep.subr.bf16.mxu0 0
    %468 = vmatpush1.bf16.msra.mxu0 0
    %469 = vmatprep.subr.bf16.mxu0 0
    %470 = vmatpush1.bf16.msra.mxu0 0
    %471 = vmatprep.subr.bf16.mxu0 0
    %472 = vmatpush1.bf16.msra.mxu0 0
    %473 = vmatprep.subr.bf16.mxu0 0
    %474 = vmatpush1.bf16.msra.mxu0 0
    %475 = vmatprep.subr.bf16.mxu0 0
    %476 = vmatpush1.bf16.msra.mxu0 0
    %477 = vmatprep.subr.bf16.mxu0 0
    %478 = vmatpush1.bf16.msra.mxu0 0
    %479 = vmatprep.subr.bf16.mxu0 0
    %480 = vmatpush1.bf16.msra.mxu0 0
    %481 = vmatprep.subr.bf16.mxu0 0
    %482 = vmatpush1.bf16.msra.mxu0 0
    %483 = vmatprep.subr.bf16.mxu0 0
    %484 = vmatpush1.bf16.msra.mxu0 0
    %485 = vmatprep.subr.bf16.mxu0 0
    %486 = vmatpush1.bf16.msra.mxu0 0
    %487 = vmatprep.subr.bf16.mxu0 0
    %488 = vmatpush1.bf16.msra.mxu0 0
    %489 = vmatprep.subr.bf16.mxu0 0
    %490 = vmatpush1.bf16.msra.mxu0 0
    %491 = vmatprep.subr.bf16.mxu0 0
    %492 = vmatpush1.bf16.msra.mxu0 0
    %493 = vmatprep.subr.bf16.mxu0 0
    %494 = vmatpush1.bf16.msra.mxu0 0
    %495 = vmatprep.mubr.bf16.mxu0 0
    %496 = vmatmul.mubr.bf16.gmra.mrb[0].mxu0 %v457
    %v497 = vpop.f32.mrb[0].mxu0
    %v498 = vadd.f32 0.0, %v497
    %v499 = vpop.f32.mrb[0].mxu0
    %v500 = vpop.f32.mrb[0].mxu0
    %v501 = vpop.f32.mrb[0].mxu0
    %502 = vdwg.mxu0
    %504 = vrot.lane.b32.xlu0 %v343, 120
    %v505 = vpop.permute.xlu0 %504
    %507 = vrot.lane.b32.xlu0 %v344, 120
    %v508 = vpop.permute.xlu0 %507
    %v510 = vsel %vm396, %v505, 0
    %v513 = vsel %vm396, %v508, 0
    %515 = vmatprep.subr.bf16.mxu0 0
    %516 = vmatpush1.bf16.xpose.msra.mxu0 %v513
    %517 = vmatprep.subr.bf16.mxu0 0
    %518 = vmatpush1.bf16.xpose.msra.mxu0 0
    %519 = vmatprep.subr.bf16.mxu0 0
    %520 = vmatpush1.bf16.xpose.msra.mxu0 0
    %521 = vmatprep.subr.bf16.mxu0 0
    %522 = vmatpush1.bf16.xpose.msra.mxu0 0
    %523 = vmatprep.subr.bf16.mxu0 0
    %524 = vmatpush1.bf16.xpose.msra.mxu0 0
    %525 = vmatprep.subr.bf16.mxu0 0
    %526 = vmatpush1.bf16.xpose.msra.mxu0 0
    %527 = vmatprep.subr.bf16.mxu0 0
    %528 = vmatpush1.bf16.xpose.msra.mxu0 0
    %529 = vmatprep.subr.bf16.mxu0 0
    %530 = vmatpush1.bf16.xpose.msra.mxu0 0
    %531 = vmatprep.subr.bf16.mxu0 0
    %532 = vmatpush1.bf16.xpose.msra.mxu0 0
    %533 = vmatprep.subr.bf16.mxu0 0
    %534 = vmatpush1.bf16.xpose.msra.mxu0 0
    %535 = vmatprep.subr.bf16.mxu0 0
    %536 = vmatpush1.bf16.xpose.msra.mxu0 0
    %537 = vmatprep.subr.bf16.mxu0 0
    %538 = vmatpush1.bf16.xpose.msra.mxu0 0
    %539 = vmatprep.subr.bf16.mxu0 0
    %540 = vmatpush1.bf16.xpose.msra.mxu0 0
    %541 = vmatprep.subr.bf16.mxu0 0
    %542 = vmatpush1.bf16.xpose.msra.mxu0 0
    %543 = vmatprep.subr.bf16.mxu0 0
    %544 = vmatpush1.bf16.xpose.msra.mxu0 0
    %545 = vmatprep.subr.bf16.mxu0 0
    %546 = vmatpush1.bf16.xpose.msra.mxu0 0
    %547 = vmatprep.mubr.bf16.mxu0 0
    %548 = vmatmul.mubr.bf16.gmra.mrb[0].mxu0 %v510
    %v549 = vpop.f32.mrb[0].mxu0
    %v550 = vadd.f32 0.0, %v549
    %v551 = vpop.f32.mrb[0].mxu0
    %v552 = vpop.f32.mrb[0].mxu0
    %v553 = vpop.f32.mrb[0].mxu0
    %554 = vdwg.mxu0
    %v555 = vsel %vm394, -1e+18, %v550
    %v556 = vsel %vm396, %v555, -inf
    %557 = vmax.xlane.f32.xlu0 %v556
    %v558 = vpop.xlane.xlu0 %557
    %v559 = vsub.f32 %v555, %v558
    %v560 = vmul.f32 %v559, 1.442695
    %v561 = vpow.pop %v560
    %v562 = vsel %vm396, %v561, 0.0
    %563 = vadd.xlane.f32.xlu0 %v562
    %v564 = vpop.xlane.xlu0 %563
    %v565 = vrcp.pop %v564
    %v566 = vmul.f32 %v561, %v565
    %v567 = vpack.c.bf16 %v566, %v566
    %569 = vrot.lane.b32.xlu0 %v398, 120
    %v570 = vpop.permute.xlu0 %569
    %v572 = vsel %vm396, %v567, 0
    %v575 = vsel %vm459, %v570, 0
    %577 = vmatprep.subr.bf16.mxu0 0
    %578 = vmatpush1.bf16.msra.mxu0 %v575
    %579 = vmatprep.subr.bf16.mxu0 0
    %580 = vmatpush1.bf16.msra.mxu0 0
    %581 = vmatprep.subr.bf16.mxu0 0
    %582 = vmatpush1.bf16.msra.mxu0 0
    %583 = vmatprep.subr.bf16.mxu0 0
    %584 = vmatpush1.bf16.msra.mxu0 0
    %585 = vmatprep.subr.bf16.mxu0 0
    %586 = vmatpush1.bf16.msra.mxu0 0
    %587 = vmatprep.subr.bf16.mxu0 0
    %588 = vmatpush1.bf16.msra.mxu0 0
    %589 = vmatprep.subr.bf16.mxu0 0
    %590 = vmatpush1.bf16.msra.mxu0 0
    %591 = vmatprep.subr.bf16.mxu0 0
    %592 = vmatpush1.bf16.msra.mxu0 0
    %593 = vmatprep.subr.bf16.mxu0 0
    %594 = vmatpush1.bf16.msra.mxu0 0
    %595 = vmatprep.subr.bf16.mxu0 0
    %596 = vmatpush1.bf16.msra.mxu0 0
    %597 = vmatprep.subr.bf16.mxu0 0
    %598 = vmatpush1.bf16.msra.mxu0 0
    %599 = vmatprep.subr.bf16.mxu0 0
    %600 = vmatpush1.bf16.msra.mxu0 0
    %601 = vmatprep.subr.bf16.mxu0 0
    %602 = vmatpush1.bf16.msra.mxu0 0
    %603 = vmatprep.subr.bf16.mxu0 0
    %604 = vmatpush1.bf16.msra.mxu0 0
    %605 = vmatprep.subr.bf16.mxu0 0
    %606 = vmatpush1.bf16.msra.mxu0 0
    %607 = vmatprep.subr.bf16.mxu0 0
    %608 = vmatpush1.bf16.msra.mxu0 0
    %609 = vmatprep.mubr.bf16.mxu0 0
    %610 = vmatmul.mubr.bf16.gmra.mrb[0].mxu0 %v572
    %v611 = vpop.f32.mrb[0].mxu0
    %v612 = vadd.f32 0.0, %v611
    %v613 = vpop.f32.mrb[0].mxu0
    %v614 = vpop.f32.mrb[0].mxu0
    %v615 = vpop.f32.mrb[0].mxu0
    %616 = vdwg.mxu0
    %617 = vrot.lane.b32.xlu0 %v343, 112
    %v618 = vpop.permute.xlu0 %617
    %619 = vrot.lane.b32.xlu0 %v344, 112
    %v620 = vpop.permute.xlu0 %619
    %v622 = vsel %vm396, %v618, 0
    %v625 = vsel %vm396, %v620, 0
    %627 = vmatprep.subr.bf16.mxu0 0
    %628 = vmatpush1.bf16.xpose.msra.mxu0 %v625
    %629 = vmatprep.subr.bf16.mxu0 0
    %630 = vmatpush1.bf16.xpose.msra.mxu0 0
    %631 = vmatprep.subr.bf16.mxu0 0
    %632 = vmatpush1.bf16.xpose.msra.mxu0 0
    %633 = vmatprep.subr.bf16.mxu0 0
    %634 = vmatpush1.bf16.xpose.msra.mxu0 0
    %635 = vmatprep.subr.bf16.mxu0 0
    %636 = vmatpush1.bf16.xpose.msra.mxu0 0
    %637 = vmatprep.subr.bf16.mxu0 0
    %638 = vmatpush1.bf16.xpose.msra.mxu0 0
    %639 = vmatprep.subr.bf16.mxu0 0
    %640 = vmatpush1.bf16.xpose.msra.mxu0 0
    %641 = vmatprep.subr.bf16.mxu0 0
    %642 = vmatpush1.bf16.xpose.msra.mxu0 0
    %643 = vmatprep.subr.bf16.mxu0 0
    %644 = vmatpush1.bf16.xpose.msra.mxu0 0
    %645 = vmatprep.subr.bf16.mxu0 0
    %646 = vmatpush1.bf16.xpose.msra.mxu0 0
    %647 = vmatprep.subr.bf16.mxu0 0
    %648 = vmatpush1.bf16.xpose.msra.mxu0 0
    %649 = vmatprep.subr.bf16.mxu0 0
    %650 = vmatpush1.bf16.xpose.msra.mxu0 0
    %651 = vmatprep.subr.bf16.mxu0 0
    %652 = vmatpush1.bf16.xpose.msra.mxu0 0
    %653 = vmatprep.subr.bf16.mxu0 0
    %654 = vmatpush1.bf16.xpose.msra.mxu0 0
    %655 = vmatprep.subr.bf16.mxu0 0
    %656 = vmatpush1.bf16.xpose.msra.mxu0 0
    %657 = vmatprep.subr.bf16.mxu0 0
    %658 = vmatpush1.bf16.xpose.msra.mxu0 0
    %659 = vmatprep.mubr.bf16.mxu0 0
    %660 = vmatmul.mubr.bf16.gmra.mrb[0].mxu0 %v622
    %v661 = vpop.f32.mrb[0].mxu0
    %v662 = vadd.f32 0.0, %v661
    %v663 = vpop.f32.mrb[0].mxu0
    %v664 = vpop.f32.mrb[0].mxu0
    %v665 = vpop.f32.mrb[0].mxu0
    %666 = vdwg.mxu0
    %v667 = vsel %vm394, -1e+18, %v662
    %v668 = vsel %vm396, %v667, -inf
    %669 = vmax.xlane.f32.xlu0 %v668
    %v670 = vpop.xlane.xlu0 %669
    %v671 = vsub.f32 %v667, %v670
    %v672 = vmul.f32 %v671, 1.442695
    %v673 = vpow.pop %v672
    %v674 = vsel %vm396, %v673, 0.0
    %675 = vadd.xlane.f32.xlu0 %v674
    %v676 = vpop.xlane.xlu0 %675
    %v677 = vrcp.pop %v676
    %v678 = vmul.f32 %v673, %v677
    %v679 = vpack.c.bf16 %v678, %v678
    %680 = vrot.lane.b32.xlu0 %v398, 112
    %v681 = vpop.permute.xlu0 %680
    %v683 = vsel %vm396, %v679, 0
    %v686 = vsel %vm459, %v681, 0
    %688 = vmatprep.subr.bf16.mxu0 0
    %689 = vmatpush1.bf16.msra.mxu0 %v686
    %690 = vmatprep.subr.bf16.mxu0 0
    %691 = vmatpush1.bf16.msra.mxu0 0
    %692 = vmatprep.subr.bf16.mxu0 0
    %693 = vmatpush1.bf16.msra.mxu0 0
    %694 = vmatprep.subr.bf16.mxu0 0
    %695 = vmatpush1.bf16.msra.mxu0 0
    %696 = vmatprep.subr.bf16.mxu0 0
    %697 = vmatpush1.bf16.msra.mxu0 0
    %698 = vmatprep.subr.bf16.mxu0 0
    %699 = vmatpush1.bf16.msra.mxu0 0
    %700 = vmatprep.subr.bf16.mxu0 0
    %701 = vmatpush1.bf16.msra.mxu0 0
    %702 = vmatprep.subr.bf16.mxu0 0
    %703 = vmatpush1.bf16.msra.mxu0 0
    %704 = vmatprep.subr.bf16.mxu0 0
    %705 = vmatpush1.bf16.msra.mxu0 0
    %706 = vmatprep.subr.bf16.mxu0 0
    %707 = vmatpush1.bf16.msra.mxu0 0
    %708 = vmatprep.subr.bf16.mxu0 0
    %709 = vmatpush1.bf16.msra.mxu0 0
    %710 = vmatprep.subr.bf16.mxu0 0
    %711 = vmatpush1.bf16.msra.mxu0 0
    %712 = vmatprep.subr.bf16.mxu0 0
    %713 = vmatpush1.bf16.msra.mxu0 0
    %714 = vmatprep.subr.bf16.mxu0 0
    %715 = vmatpush1.bf16.msra.mxu0 0
    %716 = vmatprep.subr.bf16.mxu0 0
    %717 = vmatpush1.bf16.msra.mxu0 0
    %718 = vmatprep.subr.bf16.mxu0 0
    %719 = vmatpush1.bf16.msra.mxu0 0
    %720 = vmatprep.mubr.bf16.mxu0 0
    %721 = vmatmul.mubr.bf16.gmra.mrb[0].mxu0 %v683
    %v722 = vpop.f32.mrb[0].mxu0
    %v723 = vadd.f32 0.0, %v722
    %v724 = vpop.f32.mrb[0].mxu0
    %v725 = vpop.f32.mrb[0].mxu0
    %v726 = vpop.f32.mrb[0].mxu0
    %727 = vdwg.mxu0
    %728 = vrot.lane.b32.xlu0 %v343, 104
    %v729 = vpop.permute.xlu0 %728
    %730 = vrot.lane.b32.xlu0 %v344, 104
    %v731 = vpop.permute.xlu0 %730
    %v733 = vsel %vm396, %v729, 0
    %v736 = vsel %vm396, %v731, 0
    %738 = vmatprep.subr.bf16.mxu0 0
    %739 = vmatpush1.bf16.xpose.msra.mxu0 %v736
    %740 = vmatprep.subr.bf16.mxu0 0
    %741 = vmatpush1.bf16.xpose.msra.mxu0 0
    %742 = vmatprep.subr.bf16.mxu0 0
    %743 = vmatpush1.bf16.xpose.msra.mxu0 0
    %744 = vmatprep.subr.bf16.mxu0 0
    %745 = vmatpush1.bf16.xpose.msra.mxu0 0
    %746 = vmatprep.subr.bf16.mxu0 0
    %747 = vmatpush1.bf16.xpose.msra.mxu0 0
    %748 = vmatprep.subr.bf16.mxu0 0
    %749 = vmatpush1.bf16.xpose.msra.mxu0 0
    %750 = vmatprep.subr.bf16.mxu0 0
    %751 = vmatpush1.bf16.xpose.msra.mxu0 0
    %752 = vmatprep.subr.bf16.mxu0 0
    %753 = vmatpush1.bf16.xpose.msra.mxu0 0
    %754 = vmatprep.subr.bf16.mxu0 0
    %755 = vmatpush1.bf16.xpose.msra.mxu0 0
    %756 = vmatprep.subr.bf16.mxu0 0
    %757 = vmatpush1.bf16.xpose.msra.mxu0 0
    %758 = vmatprep.subr.bf16.mxu0 0
    %759 = vmatpush1.bf16.xpose.msra.mxu0 0
    %760 = vmatprep.subr.bf16.mxu0 0
    %761 = vmatpush1.bf16.xpose.msra.mxu0 0
    %762 = vmatprep.subr.bf16.mxu0 0
    %763 = vmatpush1.bf16.xpose.msra.mxu0 0
    %764 = vmatprep.subr.bf16.mxu0 0
    %765 = vmatpush1.bf16.xpose.msra.mxu0 0
    %766 = vmatprep.subr.bf16.mxu0 0
    %767 = vmatpush1.bf16.xpose.msra.mxu0 0
    %768 = vmatprep.subr.bf16.mxu0 0
    %769 = vmatpush1.bf16.xpose.msra.mxu0 0
    %770 = vmatprep.mubr.bf16.mxu0 0
    %771 = vmatmul.mubr.bf16.gmra.mrb[0].mxu0 %v733
    %v772 = vpop.f32.mrb[0].mxu0
    %v773 = vadd.f32 0.0, %v772
    %v774 = vpop.f32.mrb[0].mxu0
    %v775 = vpop.f32.mrb[0].mxu0
    %v776 = vpop.f32.mrb[0].mxu0
    %777 = vdwg.mxu0
    %v778 = vsel %vm394, -1e+18, %v773
    %v779 = vsel %vm396, %v778, -inf
    %780 = vmax.xlane.f32.xlu0 %v779
    %v781 = vpop.xlane.xlu0 %780
    %v782 = vsub.f32 %v778, %v781
    %v783 = vmul.f32 %v782, 1.442695
    %v784 = vpow.pop %v783
    %v785 = vsel %vm396, %v784, 0.0
    %786 = vadd.xlane.f32.xlu0 %v785
    %v787 = vpop.xlane.xlu0 %786
    %v788 = vrcp.pop %v787
    %v789 = vmul.f32 %v784, %v788
    %v790 = vpack.c.bf16 %v789, %v789
    %791 = vrot.lane.b32.xlu0 %v398, 104
    %v792 = vpop.permute.xlu0 %791
    %v794 = vsel %vm396, %v790, 0
    %v797 = vsel %vm459, %v792, 0
    %799 = vmatprep.subr.bf16.mxu0 0
    %800 = vmatpush1.bf16.msra.mxu0 %v797
    %801 = vmatprep.subr.bf16.mxu0 0
    %802 = vmatpush1.bf16.msra.mxu0 0
    %803 = vmatprep.subr.bf16.mxu0 0
    %804 = vmatpush1.bf16.msra.mxu0 0
    %805 = vmatprep.subr.bf16.mxu0 0
    %806 = vmatpush1.bf16.msra.mxu0 0
    %807 = vmatprep.subr.bf16.mxu0 0
    %808 = vmatpush1.bf16.msra.mxu0 0
    %809 = vmatprep.subr.bf16.mxu0 0
    %810 = vmatpush1.bf16.msra.mxu0 0
    %811 = vmatprep.subr.bf16.mxu0 0
    %812 = vmatpush1.bf16.msra.mxu0 0
    %813 = vmatprep.subr.bf16.mxu0 0
    %814 = vmatpush1.bf16.msra.mxu0 0
    %815 = vmatprep.subr.bf16.mxu0 0
    %816 = vmatpush1.bf16.msra.mxu0 0
    %817 = vmatprep.subr.bf16.mxu0 0
    %818 = vmatpush1.bf16.msra.mxu0 0
    %819 = vmatprep.subr.bf16.mxu0 0
    %820 = vmatpush1.bf16.msra.mxu0 0
    %821 = vmatprep.subr.bf16.mxu0 0
    %822 = vmatpush1.bf16.msra.mxu0 0
    %823 = vmatprep.subr.bf16.mxu0 0
    %824 = vmatpush1.bf16.msra.mxu0 0
    %825 = vmatprep.subr.bf16.mxu0 0
    %826 = vmatpush1.bf16.msra.mxu0 0
    %827 = vmatprep.subr.bf16.mxu0 0
    %828 = vmatpush1.bf16.msra.mxu0 0
    %829 = vmatprep.subr.bf16.mxu0 0
    %830 = vmatpush1.bf16.msra.mxu0 0
    %831 = vmatprep.mubr.bf16.mxu0 0
    %832 = vmatmul.mubr.bf16.gmra.mrb[0].mxu0 %v794
    %v833 = vpop.f32.mrb[0].mxu0
    %v834 = vadd.f32 0.0, %v833
    %v835 = vpop.f32.mrb[0].mxu0
    %v836 = vpop.f32.mrb[0].mxu0
    %v837 = vpop.f32.mrb[0].mxu0
    %838 = vdwg.mxu0
    %840 = vrot.lane.b32.xlu0 %v612, 8
    %v841 = vpop.permute.xlu0 %840
    %844 = vrot.lane.b32.xlu0 %v723, 16
    %v845 = vpop.permute.xlu0 %844
    %848 = vrot.lane.b32.xlu0 %v834, 24
    %v849 = vpop.permute.xlu0 %848
    %v851 = vsel %vm396, %v498, %v841
    %vm852 = vcmask 130048
    %v853 = vsel %vm852, %v851, %v845
    %vm854 = vcmask 195584
    %v855 = vsel %vm854, %v853, %v849
    %v856 = vpack.c.bf16 %v855, %v855
    %v861 = vunpack.c.l.b16 %v166
    %v862 = vunpack.c.l.b16 %v167
    %v863 = vunpack.c.l.b16 %v168
    %v864 = vunpack.c.l.b16 %v169
    %v865 = vpack.c.b16 %v862, %v861
    %v866 = vpack.c.b16 %v864, %v863
    %v870 = vsel %vm182, %v856, 0
    %872 = vmatprep.subr.bf16.mxu0 0
    %873 = vmatpush1.bf16.msra.mxu0 %v865
    %874 = vmatprep.subr.bf16.mxu0 0
    %875 = vmatpush1.bf16.msra.mxu0 %v866
    %876 = vmatprep.subr.bf16.mxu0 0
    %877 = vmatpush1.bf16.msra.mxu0 0
    %878 = vmatprep.subr.bf16.mxu0 0
    %879 = vmatpush1.bf16.msra.mxu0 0
    %880 = vmatprep.subr.bf16.mxu0 0
    %881 = vmatpush1.bf16.msra.mxu0 0
    %882 = vmatprep.subr.bf16.mxu0 0
    %883 = vmatpush1.bf16.msra.mxu0 0
    %884 = vmatprep.subr.bf16.mxu0 0
    %885 = vmatpush1.bf16.msra.mxu0 0
    %886 = vmatprep.subr.bf16.mxu0 0
    %887 = vmatpush1.bf16.msra.mxu0 0
    %888 = vmatprep.subr.bf16.mxu0 0
    %889 = vmatpush1.bf16.msra.mxu0 0
    %890 = vmatprep.subr.bf16.mxu0 0
    %891 = vmatpush1.bf16.msra.mxu0 0
    %892 = vmatprep.subr.bf16.mxu0 0
    %893 = vmatpush1.bf16.msra.mxu0 0
    %894 = vmatprep.subr.bf16.mxu0 0
    %895 = vmatpush1.bf16.msra.mxu0 0
    %896 = vmatprep.subr.bf16.mxu0 0
    %897 = vmatpush1.bf16.msra.mxu0 0
    %898 = vmatprep.subr.bf16.mxu0 0
    %899 = vmatpush1.bf16.msra.mxu0 0
    %900 = vmatprep.subr.bf16.mxu0 0
    %901 = vmatpush1.bf16.msra.mxu0 0
    %902 = vmatprep.subr.bf16.mxu0 0
    %903 = vmatpush1.bf16.msra.mxu0 0
    %904 = vmatprep.mubr.bf16.mxu0 0
    %905 = vmatmul.mubr.bf16.gmra.mrb[0].mxu0 %v870
    %v906 = vpop.f32.mrb[0].mxu0
    %v907 = vadd.f32 0.0, %v906
    %v908 = vpop.f32.mrb[0].mxu0
    %v909 = vpop.f32.mrb[0].mxu0
    %v910 = vpop.f32.mrb[0].mxu0
    %911 = vdwg.mxu0
    %912 = vst.msk [vmem:[#allocation16] sm:$0xff] %vm182, %v907
    %s913 = scalar_lea.vmem [#allocation8], 2
    %v914 = vld [vmem:[%s913] sm:$0x3]
    %vm915 = vnez %v914
    %v916 = vpack.c.bf16 %v228, %v228
    %v917 = vpack.c.bf16 %v282, %v282
    %v919 = vsel %vm182, %v916, 0
    %v922 = vsel %vm182, %v917, 0
    %924 = vmatprep.subr.bf16.mxu0 0
    %925 = vmatpush1.bf16.xpose.msra.mxu0 %v922
    %926 = vmatprep.subr.bf16.mxu0 0
    %927 = vmatpush1.bf16.xpose.msra.mxu0 0
    %928 = vmatprep.subr.bf16.mxu0 0
    %929 = vmatpush1.bf16.xpose.msra.mxu0 0
    %930 = vmatprep.subr.bf16.mxu0 0
    %931 = vmatpush1.bf16.xpose.msra.mxu0 0
    %932 = vmatprep.subr.bf16.mxu0 0
    %933 = vmatpush1.bf16.xpose.msra.mxu0 0
    %934 = vmatprep.subr.bf16.mxu0 0
    %935 = vmatpush1.bf16.xpose.msra.mxu0 0
    %936 = vmatprep.subr.bf16.mxu0 0
    %937 = vmatpush1.bf16.xpose.msra.mxu0 0
    %938 = vmatprep.subr.bf16.mxu0 0
    %939 = vmatpush1.bf16.xpose.msra.mxu0 0
    %940 = vmatprep.subr.bf16.mxu0 0
    %941 = vmatpush1.bf16.xpose.msra.mxu0 0
    %942 = vmatprep.subr.bf16.mxu0 0
    %943 = vmatpush1.bf16.xpose.msra.mxu0 0
    %944 = vmatprep.subr.bf16.mxu0 0
    %945 = vmatpush1.bf16.xpose.msra.mxu0 0
    %946 = vmatprep.subr.bf16.mxu0 0
    %947 = vmatpush1.bf16.xpose.msra.mxu0 0
    %948 = vmatprep.subr.bf16.mxu0 0
    %949 = vmatpush1.bf16.xpose.msra.mxu0 0
    %950 = vmatprep.subr.bf16.mxu0 0
    %951 = vmatpush1.bf16.xpose.msra.mxu0 0
    %952 = vmatprep.subr.bf16.mxu0 0
    %953 = vmatpush1.bf16.xpose.msra.mxu0 0
    %954 = vmatprep.subr.bf16.mxu0 0
    %955 = vmatpush1.bf16.xpose.msra.mxu0 0
    %956 = vmatprep.mubr.bf16.mxu0 0
    %957 = vmatmul.mubr.bf16.gmra.mrb[0].mxu0 %v919
    %v958 = vpop.f32.mrb[0].mxu0
    %v959 = vadd.f32 0.0, %v958
    %v960 = vpop.f32.mrb[0].mxu0
    %v961 = vpop.f32.mrb[0].mxu0
    %v962 = vpop.f32.mrb[0].mxu0
    %963 = vdwg.mxu0
    %v964 = vmul.f32 %v959, 0.25
    %v965 = vsel %vm915, 16843009, 0
    %v966 = vunpack.c.0.s8 %v965
    %vm967 = vcmp.ne.s32.totalorder %v966, 0
    %v968 = vsel %vm967, -1e+18, %v964
    %s969 = scalar_lea.vmem [#allocation17], 8
    %970 = vst.msk [vmem:[%s969] sm:$0xff] %vm396, %v968
    %v971 = vpack.c.bf16 %v338, %v338
    %v972 = vsel %vm396, %v916, 0
    %v974 = vsel %vm396, %v917, 0
    %976 = vmatprep.subr.bf16.mxu0 0
    %977 = vmatpush1.bf16.xpose.msra.mxu0 %v974
    %978 = vmatprep.subr.bf16.mxu0 0
    %979 = vmatpush1.bf16.xpose.msra.mxu0 0
    %980 = vmatprep.subr.bf16.mxu0 0
    %981 = vmatpush1.bf16.xpose.msra.mxu0 0
    %982 = vmatprep.subr.bf16.mxu0 0
    %983 = vmatpush1.bf16.xpose.msra.mxu0 0
    %984 = vmatprep.subr.bf16.mxu0 0
    %985 = vmatpush1.bf16.xpose.msra.mxu0 0
    %986 = vmatprep.subr.bf16.mxu0 0
    %987 = vmatpush1.bf16.xpose.msra.mxu0 0
    %988 = vmatprep.subr.bf16.mxu0 0
    %989 = vmatpush1.bf16.xpose.msra.mxu0 0
    %990 = vmatprep.subr.bf16.mxu0 0
    %991 = vmatpush1.bf16.xpose.msra.mxu0 0
    %992 = vmatprep.subr.bf16.mxu0 0
    %993 = vmatpush1.bf16.xpose.msra.mxu0 0
    %994 = vmatprep.subr.bf16.mxu0 0
    %995 = vmatpush1.bf16.xpose.msra.mxu0 0
    %996 = vmatprep.subr.bf16.mxu0 0
    %997 = vmatpush1.bf16.xpose.msra.mxu0 0
    %998 = vmatprep.subr.bf16.mxu0 0
    %999 = vmatpush1.bf16.xpose.msra.mxu0 0
    %1000 = vmatprep.subr.bf16.mxu0 0
    %1001 = vmatpush1.bf16.xpose.msra.mxu0 0
    %1002 = vmatprep.subr.bf16.mxu0 0
    %1003 = vmatpush1.bf16.xpose.msra.mxu0 0
    %1004 = vmatprep.subr.bf16.mxu0 0
    %1005 = vmatpush1.bf16.xpose.msra.mxu0 0
    %1006 = vmatprep.subr.bf16.mxu0 0
    %1007 = vmatpush1.bf16.xpose.msra.mxu0 0
    %1008 = vmatprep.mubr.bf16.mxu0 0
    %1009 = vmatmul.mubr.bf16.gmra.mrb[0].mxu0 %v972
    %v1010 = vpop.f32.mrb[0].mxu0
    %v1011 = vadd.f32 0.0, %v1010
    %v1012 = vpop.f32.mrb[0].mxu0
    %v1013 = vpop.f32.mrb[0].mxu0
    %v1014 = vpop.f32.mrb[0].mxu0
    %1015 = vdwg.mxu0
    %v1016 = vsel %vm967, -1e+18, %v1011
    %v1017 = vsel %vm396, %v1016, -inf
    %1018 = vmax.xlane.f32.xlu0 %v1017
    %v1019 = vpop.xlane.xlu0 %1018
    %v1020 = vsub.f32 %v1016, %v1019
    %v1021 = vmul.f32 %v1020, 1.442695
    %v1022 = vpow.pop %v1021
    %v1023 = vsel %vm396, %v1022, 0.0
    %1024 = vadd.xlane.f32.xlu0 %v1023
    %v1025 = vpop.xlane.xlu0 %1024
    %v1026 = vrcp.pop %v1025
    %v1027 = vmul.f32 %v1022, %v1026
    %v1028 = vpack.c.bf16 %v1027, %v1027
    %v1030 = vsel %vm396, %v1028, 0
    %v1033 = vsel %vm459, %v971, 0
    %1035 = vmatprep.subr.bf16.mxu0 0
    %1036 = vmatpush1.bf16.msra.mxu0 %v1033
    %1037 = vmatprep.subr.bf16.mxu0 0
    %1038 = vmatpush1.bf16.msra.mxu0 0
    %1039 = vmatprep.subr.bf16.mxu0 0
    %1040 = vmatpush1.bf16.msra.mxu0 0
    %1041 = vmatprep.subr.bf16.mxu0 0
    %1042 = vmatpush1.bf16.msra.mxu0 0
    %1043 = vmatprep.subr.bf16.mxu0 0
    %1044 = vmatpush1.bf16.msra.mxu0 0
    %1045 = vmatprep.subr.bf16.mxu0 0
    %1046 = vmatpush1.bf16.msra.mxu0 0
    %1047 = vmatprep.subr.bf16.mxu0 0
    %1048 = vmatpush1.bf16.msra.mxu0 0
    %1049 = vmatprep.subr.bf16.mxu0 0
    %1050 = vmatpush1.bf16.msra.mxu0 0
    %1051 = vmatprep.subr.bf16.mxu0 0
    %1052 = vmatpush1.bf16.msra.mxu0 0
    %1053 = vmatprep.subr.bf16.mxu0 0
    %1054 = vmatpush1.bf16.msra.mxu0 0
    %1055 = vmatprep.subr.bf16.mxu0 0
    %1056 = vmatpush1.bf16.msra.mxu0 0
    %1057 = vmatprep.subr.bf16.mxu0 0
    %1058 = vmatpush1.bf16.msra.mxu0 0
    %1059 = vmatprep.subr.bf16.mxu0 0
    %1060 = vmatpush1.bf16.msra.mxu0 0
    %1061 = vmatprep.subr.bf16.mxu0 0
    %1062 = vmatpush1.bf16.msra.mxu0 0
    %1063 = vmatprep.subr.bf16.mxu0 0
    %1064 = vmatpush1.bf16.msra.mxu0 0
    %1065 = vmatprep.subr.bf16.mxu0 0
    %1066 = vmatpush1.bf16.msra.mxu0 0
    %1067 = vmatprep.mubr.bf16.mxu0 0
    %1068 = vmatmul.mubr.bf16.gmra.mrb[0].mxu0 %v1030
    %v1069 = vpop.f32.mrb[0].mxu0
    %v1070 = vadd.f32 0.0, %v1069
    %v1071 = vpop.f32.mrb[0].mxu0
    %v1072 = vpop.f32.mrb[0].mxu0
    %v1073 = vpop.f32.mrb[0].mxu0
    %1074 = vdwg.mxu0
    %1076 = vrot.lane.b32.xlu0 %v916, 120
    %v1077 = vpop.permute.xlu0 %1076
    %1079 = vrot.lane.b32.xlu0 %v917, 120
    %v1080 = vpop.permute.xlu0 %1079
    %v1082 = vsel %vm396, %v1077, 0
    %v1085 = vsel %vm396, %v1080, 0
    %1087 = vmatprep.subr.bf16.mxu0 0
    %1088 = vmatpush1.bf16.xpose.msra.mxu0 %v1085
    %1089 = vmatprep.subr.bf16.mxu0 0
    %1090 = vmatpush1.bf16.xpose.msra.mxu0 0
    %1091 = vmatprep.subr.bf16.mxu0 0
    %1092 = vmatpush1.bf16.xpose.msra.mxu0 0
    %1093 = vmatprep.subr.bf16.mxu0 0
    %1094 = vmatpush1.bf16.xpose.msra.mxu0 0
    %1095 = vmatprep.subr.bf16.mxu0 0
    %1096 = vmatpush1.bf16.xpose.msra.mxu0 0
    %1097 = vmatprep.subr.bf16.mxu0 0
    %1098 = vmatpush1.bf16.xpose.msra.mxu0 0
    %1099 = vmatprep.subr.bf16.mxu0 0
    %1100 = vmatpush1.bf16.xpose.msra.mxu0 0
    %1101 = vmatprep.subr.bf16.mxu0 0
    %1102 = vmatpush1.bf16.xpose.msra.mxu0 0
    %1103 = vmatprep.subr.bf16.mxu0 0
    %1104 = vmatpush1.bf16.xpose.msra.mxu0 0
    %1105 = vmatprep.subr.bf16.mxu0 0
    %1106 = vmatpush1.bf16.xpose.msra.mxu0 0
    %1107 = vmatprep.subr.bf16.mxu0 0
    %1108 = vmatpush1.bf16.xpose.msra.mxu0 0
    %1109 = vmatprep.subr.bf16.mxu0 0
    %1110 = vmatpush1.bf16.xpose.msra.mxu0 0
    %1111 = vmatprep.subr.bf16.mxu0 0
    %1112 = vmatpush1.bf16.xpose.msra.mxu0 0
    %1113 = vmatprep.subr.bf16.mxu0 0
    %1114 = vmatpush1.bf16.xpose.msra.mxu0 0
    %1115 = vmatprep.subr.bf16.mxu0 0
    %1116 = vmatpush1.bf16.xpose.msra.mxu0 0
    %1117 = vmatprep.subr.bf16.mxu0 0
    %1118 = vmatpush1.bf16.xpose.msra.mxu0 0
    %1119 = vmatprep.mubr.bf16.mxu0 0
    %1120 = vmatmul.mubr.bf16.gmra.mrb[0].mxu0 %v1082
    %v1121 = vpop.f32.mrb[0].mxu0
    %v1122 = vadd.f32 0.0, %v1121
    %v1123 = vpop.f32.mrb[0].mxu0
    %v1124 = vpop.f32.mrb[0].mxu0
    %v1125 = vpop.f32.mrb[0].mxu0
    %1126 = vdwg.mxu0
    %v1127 = vsel %vm967, -1e+18, %v1122
    %v1128 = vsel %vm396, %v1127, -inf
    %1129 = vmax.xlane.f32.xlu0 %v1128
    %v1130 = vpop.xlane.xlu0 %1129
    %v1131 = vsub.f32 %v1127, %v1130
    %v1132 = vmul.f32 %v1131, 1.442695
    %v1133 = vpow.pop %v1132
    %v1134 = vsel %vm396, %v1133, 0.0
    %1135 = vadd.xlane.f32.xlu0 %v1134
    %v1136 = vpop.xlane.xlu0 %1135
    %v1137 = vrcp.pop %v1136
    %v1138 = vmul.f32 %v1133, %v1137
    %v1139 = vpack.c.bf16 %v1138, %v1138
    %1141 = vrot.lane.b32.xlu0 %v971, 120
    %v1142 = vpop.permute.xlu0 %1141
    %v1144 = vsel %vm396, %v1139, 0
    %v1147 = vsel %vm459, %v1142, 0
    %1149 = vmatprep.subr.bf16.mxu0 0
    %1150 = vmatpush1.bf16.msra.mxu0 %v1147
    %1151 = vmatprep.subr.bf16.mxu0 0
    %1152 = vmatpush1.bf16.msra.mxu0 0
    %1153 = vmatprep.subr.bf16.mxu0 0
    %1154 = vmatpush1.bf16.msra.mxu0 0
    %1155 = vmatprep.subr.bf16.mxu0 0
    %1156 = vmatpush1.bf16.msra.mxu0 0
    %1157 = vmatprep.subr.bf16.mxu0 0
    %1158 = vmatpush1.bf16.msra.mxu0 0
    %1159 = vmatprep.subr.bf16.mxu0 0
    %1160 = vmatpush1.bf16.msra.mxu0 0
    %1161 = vmatprep.subr.bf16.mxu0 0
    %1162 = vmatpush1.bf16.msra.mxu0 0
    %1163 = vmatprep.subr.bf16.mxu0 0
    %1164 = vmatpush1.bf16.msra.mxu0 0
    %1165 = vmatprep.subr.bf16.mxu0 0
    %1166 = vmatpush1.bf16.msra.mxu0 0
    %1167 = vmatprep.subr.bf16.mxu0 0
    %1168 = vmatpush1.bf16.msra.mxu0 0
    %1169 = vmatprep.subr.bf16.mxu0 0
    %1170 = vmatpush1.bf16.msra.mxu0 0
    %1171 = vmatprep.subr.bf16.mxu0 0
    %1172 = vmatpush1.bf16.msra.mxu0 0
    %1173 = vmatprep.subr.bf16.mxu0 0
    %1174 = vmatpush1.bf16.msra.mxu0 0
    %1175 = vmatprep.subr.bf16.mxu0 0
    %1176 = vmatpush1.bf16.msra.mxu0 0
    %1177 = vmatprep.subr.bf16.mxu0 0
    %1178 = vmatpush1.bf16.msra.mxu0 0
    %1179 = vmatprep.subr.bf16.mxu0 0
    %1180 = vmatpush1.bf16.msra.mxu0 0
    %1181 = vmatprep.mubr.bf16.mxu0 0
    %1182 = vmatmul.mubr.bf16.gmra.mrb[0].mxu0 %v1144
    %v1183 = vpop.f32.mrb[0].mxu0
    %v1184 = vadd.f32 0.0, %v1183
    %v1185 = vpop.f32.mrb[0].mxu0
    %v1186 = vpop.f32.mrb[0].mxu0
    %v1187 = vpop.f32.mrb[0].mxu0
    %1188 = vdwg.mxu0
    %1189 = vrot.lane.b32.xlu0 %v916, 112
    %v1190 = vpop.permute.xlu0 %1189
    %1191 = vrot.lane.b32.xlu0 %v917, 112
    %v1192 = vpop.permute.xlu0 %1191
    %v1194 = vsel %vm396, %v1190, 0
    %v1197 = vsel %vm396, %v1192, 0
    %1199 = vmatprep.subr.bf16.mxu0 0
    %1200 = vmatpush1.bf16.xpose.msra.mxu0 %v1197
    %1201 = vmatprep.subr.bf16.mxu0 0
    %1202 = vmatpush1.bf16.xpose.msra.mxu0 0
    %1203 = vmatprep.subr.bf16.mxu0 0
    %1204 = vmatpush1.bf16.xpose.msra.mxu0 0
    %1205 = vmatprep.subr.bf16.mxu0 0
    %1206 = vmatpush1.bf16.xpose.msra.mxu0 0
    %1207 = vmatprep.subr.bf16.mxu0 0
    %1208 = vmatpush1.bf16.xpose.msra.mxu0 0
    %1209 = vmatprep.subr.bf16.mxu0 0
    %1210 = vmatpush1.bf16.xpose.msra.mxu0 0
    %1211 = vmatprep.subr.bf16.mxu0 0
    %1212 = vmatpush1.bf16.xpose.msra.mxu0 0
    %1213 = vmatprep.subr.bf16.mxu0 0
    %1214 = vmatpush1.bf16.xpose.msra.mxu0 0
    %1215 = vmatprep.subr.bf16.mxu0 0
    %1216 = vmatpush1.bf16.xpose.msra.mxu0 0
    %1217 = vmatprep.subr.bf16.mxu0 0
    %1218 = vmatpush1.bf16.xpose.msra.mxu0 0
    %1219 = vmatprep.subr.bf16.mxu0 0
    %1220 = vmatpush1.bf16.xpose.msra.mxu0 0
    %1221 = vmatprep.subr.bf16.mxu0 0
    %1222 = vmatpush1.bf16.xpose.msra.mxu0 0
    %1223 = vmatprep.subr.bf16.mxu0 0
    %1224 = vmatpush1.bf16.xpose.msra.mxu0 0
    %1225 = vmatprep.subr.bf16.mxu0 0
    %1226 = vmatpush1.bf16.xpose.msra.mxu0 0
    %1227 = vmatprep.subr.bf16.mxu0 0
    %1228 = vmatpush1.bf16.xpose.msra.mxu0 0
    %1229 = vmatprep.subr.bf16.mxu0 0
    %1230 = vmatpush1.bf16.xpose.msra.mxu0 0
    %1231 = vmatprep.mubr.bf16.mxu0 0
    %1232 = vmatmul.mubr.bf16.gmra.mrb[0].mxu0 %v1194
    %v1233 = vpop.f32.mrb[0].mxu0
    %v1234 = vadd.f32 0.0, %v1233
    %v1235 = vpop.f32.mrb[0].mxu0
    %v1236 = vpop.f32.mrb[0].mxu0
    %v1237 = vpop.f32.mrb[0].mxu0
    %1238 = vdwg.mxu0
    %v1239 = vsel %vm967, -1e+18, %v1234
    %v1240 = vsel %vm396, %v1239, -inf
    %1241 = vmax.xlane.f32.xlu0 %v1240
    %v1242 = vpop.xlane.xlu0 %1241
    %v1243 = vsub.f32 %v1239, %v1242
    %v1244 = vmul.f32 %v1243, 1.442695
    %v1245 = vpow.pop %v1244
    %v1246 = vsel %vm396, %v1245, 0.0
    %1247 = vadd.xlane.f32.xlu0 %v1246
    %v1248 = vpop.xlane.xlu0 %1247
    %v1249 = vrcp.pop %v1248
    %v1250 = vmul.f32 %v1245, %v1249
    %v1251 = vpack.c.bf16 %v1250, %v1250
    %1252 = vrot.lane.b32.xlu0 %v971, 112
    %v1253 = vpop.permute.xlu0 %1252
    %v1255 = vsel %vm396, %v1251, 0
    %v1258 = vsel %vm459, %v1253, 0
    %1260 = vmatprep.subr.bf16.mxu0 0
    %1261 = vmatpush1.bf16.msra.mxu0 %v1258
    %1262 = vmatprep.subr.bf16.mxu0 0
    %1263 = vmatpush1.bf16.msra.mxu0 0
    %1264 = vmatprep.subr.bf16.mxu0 0
    %1265 = vmatpush1.bf16.msra.mxu0 0
    %1266 = vmatprep.subr.bf16.mxu0 0
    %1267 = vmatpush1.bf16.msra.mxu0 0
    %1268 = vmatprep.subr.bf16.mxu0 0
    %1269 = vmatpush1.bf16.msra.mxu0 0
    %1270 = vmatprep.subr.bf16.mxu0 0
    %1271 = vmatpush1.bf16.msra.mxu0 0
    %1272 = vmatprep.subr.bf16.mxu0 0
    %1273 = vmatpush1.bf16.msra.mxu0 0
    %1274 = vmatprep.subr.bf16.mxu0 0
    %1275 = vmatpush1.bf16.msra.mxu0 0
    %1276 = vmatprep.subr.bf16.mxu0 0
    %1277 = vmatpush1.bf16.msra.mxu0 0
    %1278 = vmatprep.subr.bf16.mxu0 0
    %1279 = vmatpush1.bf16.msra.mxu0 0
    %1280 = vmatprep.subr.bf16.mxu0 0
    %1281 = vmatpush1.bf16.msra.mxu0 0
    %1282 = vmatprep.subr.bf16.mxu0 0
    %1283 = vmatpush1.bf16.msra.mxu0 0
    %1284 = vmatprep.subr.bf16.mxu0 0
    %1285 = vmatpush1.bf16.msra.mxu0 0
    %1286 = vmatprep.subr.bf16.mxu0 0
    %1287 = vmatpush1.bf16.msra.mxu0 0
    %1288 = vmatprep.subr.bf16.mxu0 0
    %1289 = vmatpush1.bf16.msra.mxu0 0
    %1290 = vmatprep.subr.bf16.mxu0 0
    %1291 = vmatpush1.bf16.msra.mxu0 0
    %1292 = vmatprep.mubr.bf16.mxu0 0
    %1293 = vmatmul.mubr.bf16.gmra.mrb[0].mxu0 %v1255
    %v1294 = vpop.f32.mrb[0].mxu0
    %v1295 = vadd.f32 0.0, %v1294
    %v1296 = vpop.f32.mrb[0].mxu0
    %v1297 = vpop.f32.mrb[0].mxu0
    %v1298 = vpop.f32.mrb[0].mxu0
    %1299 = vdwg.mxu0
    %1300 = vrot.lane.b32.xlu0 %v916, 104
    %v1301 = vpop.permute.xlu0 %1300
    %1302 = vrot.lane.b32.xlu0 %v917, 104
    %v1303 = vpop.permute.xlu0 %1302
    %v1305 = vsel %vm396, %v1301, 0
    %v1308 = vsel %vm396, %v1303, 0
    %1310 = vmatprep.subr.bf16.mxu0 0
    %1311 = vmatpush1.bf16.xpose.msra.mxu0 %v1308
    %1312 = vmatprep.subr.bf16.mxu0 0
    %1313 = vmatpush1.bf16.xpose.msra.mxu0 0
    %1314 = vmatprep.subr.bf16.mxu0 0
    %1315 = vmatpush1.bf16.xpose.msra.mxu0 0
    %1316 = vmatprep.subr.bf16.mxu0 0
    %1317 = vmatpush1.bf16.xpose.msra.mxu0 0
    %1318 = vmatprep.subr.bf16.mxu0 0
    %1319 = vmatpush1.bf16.xpose.msra.mxu0 0
    %1320 = vmatprep.subr.bf16.mxu0 0
    %1321 = vmatpush1.bf16.xpose.msra.mxu0 0
    %1322 = vmatprep.subr.bf16.mxu0 0
    %1323 = vmatpush1.bf16.xpose.msra.mxu0 0
    %1324 = vmatprep.subr.bf16.mxu0 0
    %1325 = vmatpush1.bf16.xpose.msra.mxu0 0
    %1326 = vmatprep.subr.bf16.mxu0 0
    %1327 = vmatpush1.bf16.xpose.msra.mxu0 0
    %1328 = vmatprep.subr.bf16.mxu0 0
    %1329 = vmatpush1.bf16.xpose.msra.mxu0 0
    %1330 = vmatprep.subr.bf16.mxu0 0
    %1331 = vmatpush1.bf16.xpose.msra.mxu0 0
    %1332 = vmatprep.subr.bf16.mxu0 0
    %1333 = vmatpush1.bf16.xpose.msra.mxu0 0
    %1334 = vmatprep.subr.bf16.mxu0 0
    %1335 = vmatpush1.bf16.xpose.msra.mxu0 0
    %1336 = vmatprep.subr.bf16.mxu0 0
    %1337 = vmatpush1.bf16.xpose.msra.mxu0 0
    %1338 = vmatprep.subr.bf16.mxu0 0
    %1339 = vmatpush1.bf16.xpose.msra.mxu0 0
    %1340 = vmatprep.subr.bf16.mxu0 0
    %1341 = vmatpush1.bf16.xpose.msra.mxu0 0
    %1342 = vmatprep.mubr.bf16.mxu0 0
    %1343 = vmatmul.mubr.bf16.gmra.mrb[0].mxu0 %v1305
    %v1344 = vpop.f32.mrb[0].mxu0
    %v1345 = vadd.f32 0.0, %v1344
    %v1346 = vpop.f32.mrb[0].mxu0
    %v1347 = vpop.f32.mrb[0].mxu0
    %v1348 = vpop.f32.mrb[0].mxu0
    %1349 = vdwg.mxu0
    %v1350 = vsel %vm967, -1e+18, %v1345
    %v1351 = vsel %vm396, %v1350, -inf
    %1352 = vmax.xlane.f32.xlu0 %v1351
    %v1353 = vpop.xlane.xlu0 %1352
    %v1354 = vsub.f32 %v1350, %v1353
    %v1355 = vmul.f32 %v1354, 1.442695
    %v1356 = vpow.pop %v1355
    %v1357 = vsel %vm396, %v1356, 0.0
    %1358 = vadd.xlane.f32.xlu0 %v1357
    %v1359 = vpop.xlane.xlu0 %1358
    %v1360 = vrcp.pop %v1359
    %v1361 = vmul.f32 %v1356, %v1360
    %v1362 = vpack.c.bf16 %v1361, %v1361
    %1363 = vrot.lane.b32.xlu0 %v971, 104
    %v1364 = vpop.permute.xlu0 %1363
    %v1366 = vsel %vm396, %v1362, 0
    %v1369 = vsel %vm459, %v1364, 0
    %1371 = vmatprep.subr.bf16.mxu0 0
    %1372 = vmatpush1.bf16.msra.mxu0 %v1369
    %1373 = vmatprep.subr.bf16.mxu0 0
    %1374 = vmatpush1.bf16.msra.mxu0 0
    %1375 = vmatprep.subr.bf16.mxu0 0
    %1376 = vmatpush1.bf16.msra.mxu0 0
    %1377 = vmatprep.subr.bf16.mxu0 0
    %1378 = vmatpush1.bf16.msra.mxu0 0
    %1379 = vmatprep.subr.bf16.mxu0 0
    %1380 = vmatpush1.bf16.msra.mxu0 0
    %1381 = vmatprep.subr.bf16.mxu0 0
    %1382 = vmatpush1.bf16.msra.mxu0 0
    %1383 = vmatprep.subr.bf16.mxu0 0
    %1384 = vmatpush1.bf16.msra.mxu0 0
    %1385 = vmatprep.subr.bf16.mxu0 0
    %1386 = vmatpush1.bf16.msra.mxu0 0
    %1387 = vmatprep.subr.bf16.mxu0 0
    %1388 = vmatpush1.bf16.msra.mxu0 0
    %1389 = vmatprep.subr.bf16.mxu0 0
    %1390 = vmatpush1.bf16.msra.mxu0 0
    %1391 = vmatprep.subr.bf16.mxu0 0
    %1392 = vmatpush1.bf16.msra.mxu0 0
    %1393 = vmatprep.subr.bf16.mxu0 0
    %1394 = vmatpush1.bf16.msra.mxu0 0
    %1395 = vmatprep.subr.bf16.mxu0 0
    %1396 = vmatpush1.bf16.msra.mxu0 0
    %1397 = vmatprep.subr.bf16.mxu0 0
    %1398 = vmatpush1.bf16.msra.mxu0 0
    %1399 = vmatprep.subr.bf16.mxu0 0
    %1400 = vmatpush1.bf16.msra.mxu0 0
    %1401 = vmatprep.subr.bf16.mxu0 0
    %1402 = vmatpush1.bf16.msra.mxu0 0
    %1403 = vmatprep.mubr.bf16.mxu0 0
    %1404 = vmatmul.mubr.bf16.gmra.mrb[0].mxu0 %v1366
    %v1405 = vpop.f32.mrb[0].mxu0
    %v1406 = vadd.f32 0.0, %v1405
    %v1407 = vpop.f32.mrb[0].mxu0
    %v1408 = vpop.f32.mrb[0].mxu0
    %v1409 = vpop.f32.mrb[0].mxu0
    %1410 = vdwg.mxu0
    %1412 = vrot.lane.b32.xlu0 %v1184, 8
    %v1413 = vpop.permute.xlu0 %1412
    %1416 = vrot.lane.b32.xlu0 %v1295, 16
    %v1417 = vpop.permute.xlu0 %1416
    %1420 = vrot.lane.b32.xlu0 %v1406, 24
    %v1421 = vpop.permute.xlu0 %1420
    %v1423 = vsel %vm396, %v1070, %v1413
    %v1424 = vsel %vm852, %v1423, %v1417
    %v1425 = vsel %vm854, %v1424, %v1421
    %v1426 = vpack.c.bf16 %v1425, %v1425
    %v1428 = vsel %vm182, %v1426, 0
    %1430 = vmatprep.subr.bf16.mxu0 0
    %1431 = vmatpush1.bf16.msra.mxu0 %v865
    %1432 = vmatprep.subr.bf16.mxu0 0
    %1433 = vmatpush1.bf16.msra.mxu0 %v866
    %1434 = vmatprep.subr.bf16.mxu0 0
    %1435 = vmatpush1.bf16.msra.mxu0 0
    %1436 = vmatprep.subr.bf16.mxu0 0
    %1437 = vmatpush1.bf16.msra.mxu0 0
    %1438 = vmatprep.subr.bf16.mxu0 0
    %1439 = vmatpush1.bf16.msra.mxu0 0
    %1440 = vmatprep.subr.bf16.mxu0 0
    %1441 = vmatpush1.bf16.msra.mxu0 0
    %1442 = vmatprep.subr.bf16.mxu0 0
    %1443 = vmatpush1.bf16.msra.mxu0 0
    %1444 = vmatprep.subr.bf16.mxu0 0
    %1445 = vmatpush1.bf16.msra.mxu0 0
    %1446 = vmatprep.subr.bf16.mxu0 0
    %1447 = vmatpush1.bf16.msra.mxu0 0
    %1448 = vmatprep.subr.bf16.mxu0 0
    %1449 = vmatpush1.bf16.msra.mxu0 0
    %1450 = vmatprep.subr.bf16.mxu0 0
    %1451 = vmatpush1.bf16.msra.mxu0 0
    %1452 = vmatprep.subr.bf16.mxu0 0
    %1453 = vmatpush1.bf16.msra.mxu0 0
    %1454 = vmatprep.subr.bf16.mxu0 0
    %1455 = vmatpush1.bf16.msra.mxu0 0
    %1456 = vmatprep.subr.bf16.mxu0 0
    %1457 = vmatpush1.bf16.msra.mxu0 0
    %1458 = vmatprep.subr.bf16.mxu0 0
    %1459 = vmatpush1.bf16.msra.mxu0 0
    %1460 = vmatprep.subr.bf16.mxu0 0
    %1461 = vmatpush1.bf16.msra.mxu0 0
    %1462 = vmatprep.mubr.bf16.mxu0 0
    %1463 = vmatmul.mubr.bf16.gmra.mrb[0].mxu0 %v1428
    %v1464 = vpop.f32.mrb[0].mxu0
    %v1465 = vadd.f32 0.0, %v1464
    %v1466 = vpop.f32.mrb[0].mxu0
    %v1467 = vpop.f32.mrb[0].mxu0
    %v1468 = vpop.f32.mrb[0].mxu0
    %1469 = vdwg.mxu0
    %s1470 = scalar_lea.vmem [#allocation16], 8
    %1471 = vst.msk [vmem:[%s1470] sm:$0xff] %vm182, %v1465
    // Predicated region
    $region66: #{tpu_custom_call.1} parent=1 // pred_check
      _
    $region67: #{tpu_custom_call.1} parent=1 // pred_check_branch
      %1473 = sbr.rel (0) target = $region69
    $region68: #{tpu_custom_call.1} parent=1 // pred_region
      %s1475 = ssub.s32 256, 256
      %1476 = vsyncadd [#allocation4], %s1475
      %s1477 = sshll.u32 [#allocation16], 4
      %s1478 = int_to_ptr.vmem [resolvable:$true] %s1477
      %1483 = dma.vmem_to_hbm [thread:$0]  %s1478, 256, %s8, [#allocation4], 128, 128, 8
    $region69: #{tpu_custom_call.1} parent=1 // pred_fallthru
      _
    // Predicated region
    $region70: #{tpu_custom_call.1} parent=1 // pred_check
      _
    $region71: #{tpu_custom_call.1} parent=1 // pred_check_branch
      %1485 = sbr.rel (0) target = $region73
    $region72: #{tpu_custom_call.1} parent=1 // pred_region
      %s1487 = ssub.s32 256, 256
      %1488 = vsyncadd [#allocation18], %s1487
      %s1489 = sshll.u32 [#allocation17], 4
      %s1490 = int_to_ptr.vmem [resolvable:$true] %s1489
      %1495 = dma.vmem_to_hbm [thread:$0]  %s1490, 256, %s9, [#allocation18], 128, 128, 8
    $region73: #{tpu_custom_call.1} parent=1 // pred_fallthru
      _
    // Predicated region
    $region74: #{tpu_custom_call.1} parent=1 // pred_check
      _
    $region75: #{tpu_custom_call.1} parent=1 // pred_check_branch
      %1497 = sbr.rel (0) target = $region77
    $region76: #{tpu_custom_call.1} parent=1 // pred_region
      %1498 = dma.done [#allocation4], 256
    $region77: #{tpu_custom_call.1} parent=1 // pred_fallthru
      _
    // Predicated region
    $region78: #{tpu_custom_call.1} parent=1 // pred_check
      _
    $region79: #{tpu_custom_call.1} parent=1 // pred_check_branch
      %1500 = sbr.rel (0) target = $region81
    $region80: #{tpu_custom_call.1} parent=1 // pred_region
      %1501 = dma.done [#allocation18], 256
    $region81: #{tpu_custom_call.1} parent=1 // pred_fallthru
      _
    %1502 = vsyncpa [#allocation3], 1
    %1503 = vsyncpa [#allocation6], 1
    %1504 = vsyncpa [#allocation9], 1
    %1505 = vsyncpa [#allocation12], 1
    %1506 = vsyncpa [#allocation15], 1
    %1507 = vsyncpa [#allocation4], 1
    %1508 = vsyncpa [#allocation18], 1

</llo_original>
